<compile_context>
chip_gen: v7x
topology: tpu7x:2x2x1
jax: 0.10.0
libtpu: 0.0.40
codegen_flags: <defaults>
</compile_context>

<pallas_src>
import functools
import math

import jax
import jax.numpy as jnp
from jax.experimental import pallas as pl
from jax.experimental.pallas import tpu as pltpu

# Model hyper-parameters (small, consistent with the module's __init__).
D_MODEL = 32
N_HEADS = 4
D_FF = 64
HEAD_DIM = D_MODEL // N_HEADS
EPS = 1e-5  # nn.LayerNorm default


def _layernorm(x, gamma, beta):
    mean = jnp.mean(x, axis=-1, keepdims=True)
    var = jnp.mean((x - mean) ** 2, axis=-1, keepdims=True)
    return (x - mean) * jax.lax.rsqrt(var + EPS) * gamma + beta


def _block_kernel(
    x_ref,            # (B_BLK, S, D)
    wqkv_t_ref,       # (D, 3D)   in_proj_weight, pre-transposed
    bqkv_ref,         # (1, 3D)   in_proj_bias
    wo_t_ref,         # (D, D)    out_proj.weight, pre-transposed
    bo_ref,           # (1, D)    out_proj.bias
    w1_t_ref,         # (D, D_FF) ff[0].weight, pre-transposed
    b1_ref,           # (1, D_FF) ff[0].bias
    w2_t_ref,         # (D_FF, D) ff[2].weight, pre-transposed
    b2_ref,           # (1, D)    ff[2].bias
    g1_ref, be1_ref,  # (1, D)    ln1 weight / bias
    g2_ref, be2_ref,  # (1, D)    ln2 weight / bias
    o_ref,            # (B_BLK, S, D)
    *, b_blk, seq,
):
    D, H, HD = D_MODEL, N_HEADS, HEAD_DIM
    M = b_blk * seq

    x3 = x_ref[...].astype(jnp.float32)                     # (B_BLK, S, D)
    x2 = x3.reshape(M, D)                                   # merge leading dims

    # ---- Fused QKV projection: one (M, D) x (D, 3D) MXU matmul ----
    qkv = jnp.dot(x2, wqkv_t_ref[...],
                  preferred_element_type=jnp.float32) + bqkv_ref[...]
    qkv3 = qkv.reshape(b_blk, seq, 3 * D)                   # split leading dim only

    scale = 1.0 / math.sqrt(HD)
    wo_t = wo_t_ref[...]                                    # (D, D)

    # ---- Multi-head attention: batched einsum per head, accumulate through
    #      the per-head slice of the output projection (no lane concat). ----
    attn2 = jnp.zeros((M, D), jnp.float32)
    for h in range(H):  # static unroll over 4 heads
        qh = qkv3[:, :, h * HD:(h + 1) * HD]                # (B_BLK, S, HD)
        kh = qkv3[:, :, D + h * HD:D + (h + 1) * HD]
        vh = qkv3[:, :, 2 * D + h * HD:2 * D + (h + 1) * HD]

        s = jnp.einsum("bqd,bkd->bqk", qh, kh,
                       preferred_element_type=jnp.float32) * scale   # (B_BLK, S, S)
        s = s - jnp.max(s, axis=-1, keepdims=True)
        p = jnp.exp(s)
        p = p * pl.reciprocal(jnp.sum(p, axis=-1, keepdims=True), approx=True)

        ctx = jnp.einsum("bqk,bkd->bqd", p, vh,
                         preferred_element_type=jnp.float32)          # (B_BLK, S, HD)
        attn2 = attn2 + jnp.dot(ctx.reshape(M, HD),
                                wo_t[h * HD:(h + 1) * HD, :],
                                preferred_element_type=jnp.float32)
    attn2 = attn2 + bo_ref[...]

    # ---- Residual + LayerNorm 1 ----
    y = _layernorm(x2 + attn2, g1_ref[...], be1_ref[...])

    # ---- Feed-forward: Linear -> ReLU -> Linear (2-D matmuls over M rows) ----
    h1 = jnp.maximum(
        jnp.dot(y, w1_t_ref[...], preferred_element_type=jnp.float32)
        + b1_ref[...], 0.0)
    ff = jnp.dot(h1, w2_t_ref[...],
                 preferred_element_type=jnp.float32) + b2_ref[...]

    # ---- Residual + LayerNorm 2 ----
    out = _layernorm(y + ff, g2_ref[...], be2_ref[...])

    o_ref[...] = out.reshape(b_blk, seq, D).astype(o_ref.dtype)


@functools.partial(jax.jit, static_argnames=("b_blk",))
def surrogate_transformer_block(x, params, b_blk=32):
    B, S, D = x.shape
    assert D == D_MODEL

    # Size the batch block for MXU occupancy, but keep >= 2 grid steps when
    # possible so both v7x TensorCores get work (grid axis is "parallel").
    b_blk = max(1, min(b_blk, pl.cdiv(B, 2)))
    n_steps = pl.cdiv(B, b_blk)
    B_pad = n_steps * b_blk
    x_p = x if B_pad == B else jnp.pad(x, ((0, B_pad - B), (0, 0), (0, 0)))

    # Pre-transpose weights once in XLA (no in-kernel XLU transposes).
    weights = [
        params["wqkv"].T, params["bqkv"],
        params["wo"].T, params["bo"],
        params["w1"].T, params["b1"],
        params["w2"].T, params["b2"],
        params["g1"], params["be1"], params["g2"], params["be2"],
    ]

    def full_spec(arr):
        nd = arr.ndim
        return pl.BlockSpec(arr.shape, lambda i, _nd=nd: (0,) * _nd)

    kernel = functools.partial(_block_kernel, b_blk=b_blk, seq=S)

    out = pl.pallas_call(
        kernel,
        out_shape=jax.ShapeDtypeStruct((B_pad, S, D), x.dtype),
        grid_spec=pltpu.PrefetchScalarGridSpec(
            num_scalar_prefetch=0,
            grid=(n_steps,),
            in_specs=[pl.BlockSpec((b_blk, S, D), lambda i: (i, 0, 0))]
                     + [full_spec(w) for w in weights],
            out_specs=pl.BlockSpec((b_blk, S, D), lambda i: (i, 0, 0)),
        ),
        compiler_params=pltpu.CompilerParams(
            dimension_semantics=("parallel",)),
    )(x_p, *weights)

    return out[:B]


def init_params(key):
    """Deterministic synthetic parameters (shapes match the PyTorch module)."""
    ks = jax.random.split(key, 8)
    s = 0.05
    return {
        # nn.MultiheadAttention: in_proj (3*D, D) + bias, out_proj (D, D) + bias
        "wqkv": s * jax.random.normal(ks[0], (3 * D_MODEL, D_MODEL), jnp.float32),
        "bqkv": s * jax.random.normal(ks[1], (1, 3 * D_MODEL), jnp.float32),
        "wo":   s * jax.random.normal(ks[2], (D_MODEL, D_MODEL), jnp.float32),
        "bo":   s * jax.random.normal(ks[3], (1, D_MODEL), jnp.float32),
        # ff = Linear(D, D_FF) -> ReLU -> Linear(D_FF, D)
        "w1":   s * jax.random.normal(ks[4], (D_FF, D_MODEL), jnp.float32),
        "b1":   s * jax.random.normal(ks[5], (1, D_FF), jnp.float32),
        "w2":   s * jax.random.normal(ks[6], (D_MODEL, D_FF), jnp.float32),
        "b2":   s * jax.random.normal(ks[7], (1, D_MODEL), jnp.float32),
        # LayerNorms (elementwise affine, default init weight=1, bias=0)
        "g1":  jnp.ones((1, D_MODEL), jnp.float32),
        "be1": jnp.zeros((1, D_MODEL), jnp.float32),
        "g2":  jnp.ones((1, D_MODEL), jnp.float32),
        "be2": jnp.zeros((1, D_MODEL), jnp.float32),
    }


def reference_block(x, p):
    """Pure-JAX reference matching nn.MultiheadAttention / the module exactly."""
    B, S, D = x.shape
    qkv = x @ p["wqkv"].T + p["bqkv"][0]
    q, k, v = jnp.split(qkv, 3, axis=-1)

    def split_heads(t):  # (B, S, D) -> (B, H, S, HEAD_DIM)
        return t.reshape(B, S, N_HEADS, HEAD_DIM).transpose(0, 2, 1, 3)

    qh, kh, vh = split_heads(q), split_heads(k), split_heads(v)
    scores = jnp.einsum("bhqd,bhkd->bhqk", qh, kh) / math.sqrt(HEAD_DIM)
    probs = jax.nn.softmax(scores, axis=-1)
    ctx = jnp.einsum("bhqk,bhkd->bhqd", probs, vh)
    ctx = ctx.transpose(0, 2, 1, 3).reshape(B, S, D)
    attn = ctx @ p["wo"].T + p["bo"][0]

    def ln(t, g, b):
        m = t.mean(-1, keepdims=True)
        va = ((t - m) ** 2).mean(-1, keepdims=True)
        return (t - m) / jnp.sqrt(va + EPS) * g[0] + b[0]

    y = ln(x + attn, p["g1"], p["be1"])
    ff = jnp.maximum(y @ p["w1"].T + p["b1"][0], 0.0) @ p["w2"].T + p["b2"][0]
    return ln(y + ff, p["g2"], p["be2"])


if __name__ == "__main__":
    key = jax.random.PRNGKey(0)
    k_x, k_x2, k_p = jax.random.split(key, 3)
    params = init_params(k_p)

    # Tolerance is 1e-3 because the softmax denominator uses the EUP
    # approximate reciprocal (pl.reciprocal(..., approx=True)).
    TOL = 1e-3

    # Small shape consistent with the module.
    B, S = 2, 8
    x = jax.random.normal(k_x, (B, S, D_MODEL), jnp.float32)
    out = jax.block_until_ready(surrogate_transformer_block(x, params))
    ref = reference_block(x, params)
    assert out.shape == (B, S, D_MODEL)
    assert jnp.allclose(out, ref, atol=TOL, rtol=TOL), "mismatch vs JAX reference (B=2)"

    # Larger batch: exercises the batch-blocked grid and the padding path.
    B2 = 33
    x2 = jax.random.normal(k_x2, (B2, S, D_MODEL), jnp.float32)
    out2 = jax.block_until_ready(surrogate_transformer_block(x2, params))
    ref2 = reference_block(x2, params)
    assert out2.shape == (B2, S, D_MODEL)
    assert jnp.allclose(out2, ref2, atol=TOL, rtol=TOL), "mismatch vs JAX reference (B=33)"

    print("KERNEL_OK")
</pallas_src>

<mosaic_0001>
module attributes {stable_mosaic.version = 11 : i64} {
  func.func @_block_kernel(%arg0: i32, %arg1: memref<1x8x32xf32, #tpu.memory_space<vmem>>, %arg2: memref<32x96xf32, #tpu.memory_space<vmem>>, %arg3: memref<1x96xf32, #tpu.memory_space<vmem>>, %arg4: memref<32x32xf32, #tpu.memory_space<vmem>>, %arg5: memref<1x32xf32, #tpu.memory_space<vmem>>, %arg6: memref<32x64xf32, #tpu.memory_space<vmem>>, %arg7: memref<1x64xf32, #tpu.memory_space<vmem>>, %arg8: memref<64x32xf32, #tpu.memory_space<vmem>>, %arg9: memref<1x32xf32, #tpu.memory_space<vmem>>, %arg10: memref<1x32xf32, #tpu.memory_space<vmem>>, %arg11: memref<1x32xf32, #tpu.memory_space<vmem>>, %arg12: memref<1x32xf32, #tpu.memory_space<vmem>>, %arg13: memref<1x32xf32, #tpu.memory_space<vmem>>, %arg14: memref<1x8x32xf32, #tpu.memory_space<vmem>>) attributes {dimension_semantics = [#tpu.dimension_semantics<parallel>], iteration_bounds = array<i64: 2>, scalar_prefetch = 0 : i64, scratch_operands = 0 : i64, tpu.core_type = #tpu.core_type<tc>, window_params = [{transform_indices = @transform_0, window_bounds = array<i64: 1, 8, 32>}, {pipeline_mode = #tpu.pipeline_mode<synchronous>, transform_indices = @transform_1, window_bounds = array<i64: 32, 96>}, {pipeline_mode = #tpu.pipeline_mode<synchronous>, transform_indices = @transform_2, window_bounds = array<i64: 1, 96>}, {pipeline_mode = #tpu.pipeline_mode<synchronous>, transform_indices = @transform_3, window_bounds = array<i64: 32, 32>}, {pipeline_mode = #tpu.pipeline_mode<synchronous>, transform_indices = @transform_4, window_bounds = array<i64: 1, 32>}, {pipeline_mode = #tpu.pipeline_mode<synchronous>, transform_indices = @transform_5, window_bounds = array<i64: 32, 64>}, {pipeline_mode = #tpu.pipeline_mode<synchronous>, transform_indices = @transform_6, window_bounds = array<i64: 1, 64>}, {pipeline_mode = #tpu.pipeline_mode<synchronous>, transform_indices = @transform_7, window_bounds = array<i64: 64, 32>}, {pipeline_mode = #tpu.pipeline_mode<synchronous>, transform_indices = @transform_8, window_bounds = array<i64: 1, 32>}, {pipeline_mode = #tpu.pipeline_mode<synchronous>, transform_indices = @transform_9, window_bounds = array<i64: 1, 32>}, {pipeline_mode = #tpu.pipeline_mode<synchronous>, transform_indices = @transform_10, window_bounds = array<i64: 1, 32>}, {pipeline_mode = #tpu.pipeline_mode<synchronous>, transform_indices = @transform_11, window_bounds = array<i64: 1, 32>}, {pipeline_mode = #tpu.pipeline_mode<synchronous>, transform_indices = @transform_12, window_bounds = array<i64: 1, 32>}, {transform_indices = @transform_13, window_bounds = array<i64: 1, 8, 32>}]} {
    %c0 = arith.constant 0 : index
    %c0_0 = arith.constant 0 : index
    %c0_1 = arith.constant 0 : index
    %0 = vector.load %arg1[%c0, %c0_0, %c0_1] : memref<1x8x32xf32, #tpu.memory_space<vmem>>, vector<1x8x32xf32>
    %1 = vector.shape_cast %0 : vector<1x8x32xf32> to vector<8x32xf32>
    %c0_2 = arith.constant 0 : index
    %c0_3 = arith.constant 0 : index
    %2 = vector.load %arg2[%c0_2, %c0_3] : memref<32x96xf32, #tpu.memory_space<vmem>>, vector<32x96xf32>
    %cst = arith.constant dense<0.000000e+00> : vector<8x96xf32>
    %3 = tpu.matmul %1, %2, %cst {dimension_numbers = #tpu.dot_dimension_numbers<[1], [0], [0], [1], [0, 0, 1, 1], [], []>} : vector<8x32xf32>, vector<32x96xf32>, vector<8x96xf32> -> vector<8x96xf32>
    %c0_4 = arith.constant 0 : index
    %c0_5 = arith.constant 0 : index
    %4 = vector.load %arg3[%c0_4, %c0_5] : memref<1x96xf32, #tpu.memory_space<vmem>>, vector<1x96xf32>
    %5 = vector.broadcast %4 : vector<1x96xf32> to vector<8x96xf32>
    %6 = arith.addf %3, %5 : vector<8x96xf32>
    %7 = vector.shape_cast %6 : vector<8x96xf32> to vector<1x8x96xf32>
    %c0_6 = arith.constant 0 : index
    %c0_7 = arith.constant 0 : index
    %8 = vector.load %arg4[%c0_6, %c0_7] : memref<32x32xf32, #tpu.memory_space<vmem>>, vector<32x32xf32>
    %cst_8 = arith.constant 0.000000e+00 : f32
    %9 = vector.broadcast %cst_8 : f32 to vector<8x32xf32>
    %10 = vector.extract_strided_slice %7 {offsets = [0, 0, 0], sizes = [1, 8, 8], strides = [1, 1, 1]} : vector<1x8x96xf32> to vector<1x8x8xf32>
    %11 = vector.extract_strided_slice %7 {offsets = [0, 0, 32], sizes = [1, 8, 8], strides = [1, 1, 1]} : vector<1x8x96xf32> to vector<1x8x8xf32>
    %12 = vector.extract_strided_slice %7 {offsets = [0, 0, 64], sizes = [1, 8, 8], strides = [1, 1, 1]} : vector<1x8x96xf32> to vector<1x8x8xf32>
    "tpu.trace_start"() <{level = 10 : i32, message = "bqd,bkd->bqk"}> : () -> ()
    %cst_9 = arith.constant dense<0.000000e+00> : vector<1x8x8xf32>
    %13 = tpu.matmul %10, %11, %cst_9 {dimension_numbers = #tpu.dot_dimension_numbers<[2], [2], [1], [1], [0, 0, 0, 1, 1, 1], [0], [0]>} : vector<1x8x8xf32>, vector<1x8x8xf32>, vector<1x8x8xf32> -> vector<1x8x8xf32>
    "tpu.trace_stop"() : () -> ()
    %cst_10 = arith.constant 0.353553385 : f32
    %14 = vector.broadcast %cst_10 : f32 to vector<1x8x8xf32>
    %15 = arith.mulf %13, %14 : vector<1x8x8xf32>
    %cst_11 = arith.constant dense<0xFF800000> : vector<1x8xf32>
    %16 = vector.multi_reduction <maximumf>, %15, %cst_11 [2] : vector<1x8x8xf32> to vector<1x8xf32>
    %17 = vector.shape_cast %16 : vector<1x8xf32> to vector<1x8x1xf32>
    %18 = vector.broadcast %17 : vector<1x8x1xf32> to vector<1x8x8xf32>
    %19 = arith.subf %15, %18 : vector<1x8x8xf32>
    %20 = math.exp %19 : vector<1x8x8xf32>
    %cst_12 = arith.constant dense<0.000000e+00> : vector<1x8xf32>
    %21 = vector.multi_reduction <add>, %20, %cst_12 [2] : vector<1x8x8xf32> to vector<1x8xf32>
    %22 = vector.shape_cast %21 : vector<1x8xf32> to vector<1x8x1xf32>
    %23 = tpu.reciprocal %22 {approx = true} : vector<1x8x1xf32> -> vector<1x8x1xf32>
    %24 = vector.broadcast %23 : vector<1x8x1xf32> to vector<1x8x8xf32>
    %25 = arith.mulf %20, %24 : vector<1x8x8xf32>
    "tpu.trace_start"() <{level = 10 : i32, message = "bqk,bkd->bqd"}> : () -> ()
    %cst_13 = arith.constant dense<0.000000e+00> : vector<1x8x8xf32>
    %26 = tpu.matmul %25, %12, %cst_13 {dimension_numbers = #tpu.dot_dimension_numbers<[2], [1], [1], [2], [0, 0, 0, 1, 1, 2], [0], [0]>} : vector<1x8x8xf32>, vector<1x8x8xf32>, vector<1x8x8xf32> -> vector<1x8x8xf32>
    "tpu.trace_stop"() : () -> ()
    %27 = vector.shape_cast %26 : vector<1x8x8xf32> to vector<8x8xf32>
    %28 = vector.extract_strided_slice %8 {offsets = [0, 0], sizes = [8, 32], strides = [1, 1]} : vector<32x32xf32> to vector<8x32xf32>
    %cst_14 = arith.constant dense<0.000000e+00> : vector<8x32xf32>
    %29 = tpu.matmul %27, %28, %cst_14 {dimension_numbers = #tpu.dot_dimension_numbers<[1], [0], [0], [1], [0, 0, 1, 1], [], []>} : vector<8x8xf32>, vector<8x32xf32>, vector<8x32xf32> -> vector<8x32xf32>
    %30 = arith.addf %9, %29 : vector<8x32xf32>
    %31 = vector.extract_strided_slice %7 {offsets = [0, 0, 8], sizes = [1, 8, 8], strides = [1, 1, 1]} : vector<1x8x96xf32> to vector<1x8x8xf32>
    %32 = vector.extract_strided_slice %7 {offsets = [0, 0, 40], sizes = [1, 8, 8], strides = [1, 1, 1]} : vector<1x8x96xf32> to vector<1x8x8xf32>
    %33 = vector.extract_strided_slice %7 {offsets = [0, 0, 72], sizes = [1, 8, 8], strides = [1, 1, 1]} : vector<1x8x96xf32> to vector<1x8x8xf32>
    "tpu.trace_start"() <{level = 10 : i32, message = "bqd,bkd->bqk"}> : () -> ()
    %cst_15 = arith.constant dense<0.000000e+00> : vector<1x8x8xf32>
    %34 = tpu.matmul %31, %32, %cst_15 {dimension_numbers = #tpu.dot_dimension_numbers<[2], [2], [1], [1], [0, 0, 0, 1, 1, 1], [0], [0]>} : vector<1x8x8xf32>, vector<1x8x8xf32>, vector<1x8x8xf32> -> vector<1x8x8xf32>
    "tpu.trace_stop"() : () -> ()
    %cst_16 = arith.constant 0.353553385 : f32
    %35 = vector.broadcast %cst_16 : f32 to vector<1x8x8xf32>
    %36 = arith.mulf %34, %35 : vector<1x8x8xf32>
    %cst_17 = arith.constant dense<0xFF800000> : vector<1x8xf32>
    %37 = vector.multi_reduction <maximumf>, %36, %cst_17 [2] : vector<1x8x8xf32> to vector<1x8xf32>
    %38 = vector.shape_cast %37 : vector<1x8xf32> to vector<1x8x1xf32>
    %39 = vector.broadcast %38 : vector<1x8x1xf32> to vector<1x8x8xf32>
    %40 = arith.subf %36, %39 : vector<1x8x8xf32>
    %41 = math.exp %40 : vector<1x8x8xf32>
    %cst_18 = arith.constant dense<0.000000e+00> : vector<1x8xf32>
    %42 = vector.multi_reduction <add>, %41, %cst_18 [2] : vector<1x8x8xf32> to vector<1x8xf32>
    %43 = vector.shape_cast %42 : vector<1x8xf32> to vector<1x8x1xf32>
    %44 = tpu.reciprocal %43 {approx = true} : vector<1x8x1xf32> -> vector<1x8x1xf32>
    %45 = vector.broadcast %44 : vector<1x8x1xf32> to vector<1x8x8xf32>
    %46 = arith.mulf %41, %45 : vector<1x8x8xf32>
    "tpu.trace_start"() <{level = 10 : i32, message = "bqk,bkd->bqd"}> : () -> ()
    %cst_19 = arith.constant dense<0.000000e+00> : vector<1x8x8xf32>
    %47 = tpu.matmul %46, %33, %cst_19 {dimension_numbers = #tpu.dot_dimension_numbers<[2], [1], [1], [2], [0, 0, 0, 1, 1, 2], [0], [0]>} : vector<1x8x8xf32>, vector<1x8x8xf32>, vector<1x8x8xf32> -> vector<1x8x8xf32>
    "tpu.trace_stop"() : () -> ()
    %48 = vector.shape_cast %47 : vector<1x8x8xf32> to vector<8x8xf32>
    %49 = vector.extract_strided_slice %8 {offsets = [8, 0], sizes = [8, 32], strides = [1, 1]} : vector<32x32xf32> to vector<8x32xf32>
    %cst_20 = arith.constant dense<0.000000e+00> : vector<8x32xf32>
    %50 = tpu.matmul %48, %49, %cst_20 {dimension_numbers = #tpu.dot_dimension_numbers<[1], [0], [0], [1], [0, 0, 1, 1], [], []>} : vector<8x8xf32>, vector<8x32xf32>, vector<8x32xf32> -> vector<8x32xf32>
    %51 = arith.addf %30, %50 : vector<8x32xf32>
    %52 = vector.extract_strided_slice %7 {offsets = [0, 0, 16], sizes = [1, 8, 8], strides = [1, 1, 1]} : vector<1x8x96xf32> to vector<1x8x8xf32>
    %53 = vector.extract_strided_slice %7 {offsets = [0, 0, 48], sizes = [1, 8, 8], strides = [1, 1, 1]} : vector<1x8x96xf32> to vector<1x8x8xf32>
    %54 = vector.extract_strided_slice %7 {offsets = [0, 0, 80], sizes = [1, 8, 8], strides = [1, 1, 1]} : vector<1x8x96xf32> to vector<1x8x8xf32>
    "tpu.trace_start"() <{level = 10 : i32, message = "bqd,bkd->bqk"}> : () -> ()
    %cst_21 = arith.constant dense<0.000000e+00> : vector<1x8x8xf32>
    %55 = tpu.matmul %52, %53, %cst_21 {dimension_numbers = #tpu.dot_dimension_numbers<[2], [2], [1], [1], [0, 0, 0, 1, 1, 1], [0], [0]>} : vector<1x8x8xf32>, vector<1x8x8xf32>, vector<1x8x8xf32> -> vector<1x8x8xf32>
    "tpu.trace_stop"() : () -> ()
    %cst_22 = arith.constant 0.353553385 : f32
    %56 = vector.broadcast %cst_22 : f32 to vector<1x8x8xf32>
    %57 = arith.mulf %55, %56 : vector<1x8x8xf32>
    %cst_23 = arith.constant dense<0xFF800000> : vector<1x8xf32>
    %58 = vector.multi_reduction <maximumf>, %57, %cst_23 [2] : vector<1x8x8xf32> to vector<1x8xf32>
    %59 = vector.shape_cast %58 : vector<1x8xf32> to vector<1x8x1xf32>
    %60 = vector.broadcast %59 : vector<1x8x1xf32> to vector<1x8x8xf32>
    %61 = arith.subf %57, %60 : vector<1x8x8xf32>
    %62 = math.exp %61 : vector<1x8x8xf32>
    %cst_24 = arith.constant dense<0.000000e+00> : vector<1x8xf32>
    %63 = vector.multi_reduction <add>, %62, %cst_24 [2] : vector<1x8x8xf32> to vector<1x8xf32>
    %64 = vector.shape_cast %63 : vector<1x8xf32> to vector<1x8x1xf32>
    %65 = tpu.reciprocal %64 {approx = true} : vector<1x8x1xf32> -> vector<1x8x1xf32>
    %66 = vector.broadcast %65 : vector<1x8x1xf32> to vector<1x8x8xf32>
    %67 = arith.mulf %62, %66 : vector<1x8x8xf32>
    "tpu.trace_start"() <{level = 10 : i32, message = "bqk,bkd->bqd"}> : () -> ()
    %cst_25 = arith.constant dense<0.000000e+00> : vector<1x8x8xf32>
    %68 = tpu.matmul %67, %54, %cst_25 {dimension_numbers = #tpu.dot_dimension_numbers<[2], [1], [1], [2], [0, 0, 0, 1, 1, 2], [0], [0]>} : vector<1x8x8xf32>, vector<1x8x8xf32>, vector<1x8x8xf32> -> vector<1x8x8xf32>
    "tpu.trace_stop"() : () -> ()
    %69 = vector.shape_cast %68 : vector<1x8x8xf32> to vector<8x8xf32>
    %70 = vector.extract_strided_slice %8 {offsets = [16, 0], sizes = [8, 32], strides = [1, 1]} : vector<32x32xf32> to vector<8x32xf32>
    %cst_26 = arith.constant dense<0.000000e+00> : vector<8x32xf32>
    %71 = tpu.matmul %69, %70, %cst_26 {dimension_numbers = #tpu.dot_dimension_numbers<[1], [0], [0], [1], [0, 0, 1, 1], [], []>} : vector<8x8xf32>, vector<8x32xf32>, vector<8x32xf32> -> vector<8x32xf32>
    %72 = arith.addf %51, %71 : vector<8x32xf32>
    %73 = vector.extract_strided_slice %7 {offsets = [0, 0, 24], sizes = [1, 8, 8], strides = [1, 1, 1]} : vector<1x8x96xf32> to vector<1x8x8xf32>
    %74 = vector.extract_strided_slice %7 {offsets = [0, 0, 56], sizes = [1, 8, 8], strides = [1, 1, 1]} : vector<1x8x96xf32> to vector<1x8x8xf32>
    %75 = vector.extract_strided_slice %7 {offsets = [0, 0, 88], sizes = [1, 8, 8], strides = [1, 1, 1]} : vector<1x8x96xf32> to vector<1x8x8xf32>
    "tpu.trace_start"() <{level = 10 : i32, message = "bqd,bkd->bqk"}> : () -> ()
    %cst_27 = arith.constant dense<0.000000e+00> : vector<1x8x8xf32>
    %76 = tpu.matmul %73, %74, %cst_27 {dimension_numbers = #tpu.dot_dimension_numbers<[2], [2], [1], [1], [0, 0, 0, 1, 1, 1], [0], [0]>} : vector<1x8x8xf32>, vector<1x8x8xf32>, vector<1x8x8xf32> -> vector<1x8x8xf32>
    "tpu.trace_stop"() : () -> ()
    %cst_28 = arith.constant 0.353553385 : f32
    %77 = vector.broadcast %cst_28 : f32 to vector<1x8x8xf32>
    %78 = arith.mulf %76, %77 : vector<1x8x8xf32>
    %cst_29 = arith.constant dense<0xFF800000> : vector<1x8xf32>
    %79 = vector.multi_reduction <maximumf>, %78, %cst_29 [2] : vector<1x8x8xf32> to vector<1x8xf32>
    %80 = vector.shape_cast %79 : vector<1x8xf32> to vector<1x8x1xf32>
    %81 = vector.broadcast %80 : vector<1x8x1xf32> to vector<1x8x8xf32>
    %82 = arith.subf %78, %81 : vector<1x8x8xf32>
    %83 = math.exp %82 : vector<1x8x8xf32>
    %cst_30 = arith.constant dense<0.000000e+00> : vector<1x8xf32>
    %84 = vector.multi_reduction <add>, %83, %cst_30 [2] : vector<1x8x8xf32> to vector<1x8xf32>
    %85 = vector.shape_cast %84 : vector<1x8xf32> to vector<1x8x1xf32>
    %86 = tpu.reciprocal %85 {approx = true} : vector<1x8x1xf32> -> vector<1x8x1xf32>
    %87 = vector.broadcast %86 : vector<1x8x1xf32> to vector<1x8x8xf32>
    %88 = arith.mulf %83, %87 : vector<1x8x8xf32>
    "tpu.trace_start"() <{level = 10 : i32, message = "bqk,bkd->bqd"}> : () -> ()
    %cst_31 = arith.constant dense<0.000000e+00> : vector<1x8x8xf32>
    %89 = tpu.matmul %88, %75, %cst_31 {dimension_numbers = #tpu.dot_dimension_numbers<[2], [1], [1], [2], [0, 0, 0, 1, 1, 2], [0], [0]>} : vector<1x8x8xf32>, vector<1x8x8xf32>, vector<1x8x8xf32> -> vector<1x8x8xf32>
    "tpu.trace_stop"() : () -> ()
    %90 = vector.shape_cast %89 : vector<1x8x8xf32> to vector<8x8xf32>
    %91 = vector.extract_strided_slice %8 {offsets = [24, 0], sizes = [8, 32], strides = [1, 1]} : vector<32x32xf32> to vector<8x32xf32>
    %cst_32 = arith.constant dense<0.000000e+00> : vector<8x32xf32>
    %92 = tpu.matmul %90, %91, %cst_32 {dimension_numbers = #tpu.dot_dimension_numbers<[1], [0], [0], [1], [0, 0, 1, 1], [], []>} : vector<8x8xf32>, vector<8x32xf32>, vector<8x32xf32> -> vector<8x32xf32>
    %93 = arith.addf %72, %92 : vector<8x32xf32>
    %c0_33 = arith.constant 0 : index
    %c0_34 = arith.constant 0 : index
    %94 = vector.load %arg5[%c0_33, %c0_34] : memref<1x32xf32, #tpu.memory_space<vmem>>, vector<1x32xf32>
    %95 = vector.broadcast %94 : vector<1x32xf32> to vector<8x32xf32>
    %96 = arith.addf %93, %95 : vector<8x32xf32>
    %97 = arith.addf %1, %96 : vector<8x32xf32>
    %c0_35 = arith.constant 0 : index
    %c0_36 = arith.constant 0 : index
    %98 = vector.load %arg10[%c0_35, %c0_36] : memref<1x32xf32, #tpu.memory_space<vmem>>, vector<1x32xf32>
    %c0_37 = arith.constant 0 : index
    %c0_38 = arith.constant 0 : index
    %99 = vector.load %arg11[%c0_37, %c0_38] : memref<1x32xf32, #tpu.memory_space<vmem>>, vector<1x32xf32>
    %cst_39 = arith.constant dense<0.000000e+00> : vector<8xf32>
    %100 = vector.multi_reduction <add>, %97, %cst_39 [1] : vector<8x32xf32> to vector<8xf32>
    %101 = vector.shape_cast %100 : vector<8xf32> to vector<8x1xf32>
    %cst_40 = arith.constant 3.200000e+01 : f32
    %102 = vector.broadcast %cst_40 : f32 to vector<8x1xf32>
    %103 = arith.divf %101, %102 : vector<8x1xf32>
    %104 = vector.broadcast %103 : vector<8x1xf32> to vector<8x32xf32>
    %105 = arith.subf %97, %104 : vector<8x32xf32>
    %106 = arith.mulf %105, %105 : vector<8x32xf32>
    %cst_41 = arith.constant dense<0.000000e+00> : vector<8xf32>
    %107 = vector.multi_reduction <add>, %106, %cst_41 [1] : vector<8x32xf32> to vector<8xf32>
    %108 = vector.shape_cast %107 : vector<8xf32> to vector<8x1xf32>
    %cst_42 = arith.constant 3.200000e+01 : f32
    %109 = vector.broadcast %cst_42 : f32 to vector<8x1xf32>
    %110 = arith.divf %108, %109 : vector<8x1xf32>
    %111 = vector.broadcast %103 : vector<8x1xf32> to vector<8x32xf32>
    %112 = arith.subf %97, %111 : vector<8x32xf32>
    %cst_43 = arith.constant 9.99999974E-6 : f32
    %113 = vector.broadcast %cst_43 : f32 to vector<8x1xf32>
    %114 = arith.addf %110, %113 : vector<8x1xf32>
    %115 = math.rsqrt %114 : vector<8x1xf32>
    %116 = vector.broadcast %115 : vector<8x1xf32> to vector<8x32xf32>
    %117 = arith.mulf %112, %116 : vector<8x32xf32>
    %118 = vector.broadcast %98 : vector<1x32xf32> to vector<8x32xf32>
    %119 = arith.mulf %117, %118 : vector<8x32xf32>
    %120 = vector.broadcast %99 : vector<1x32xf32> to vector<8x32xf32>
    %121 = arith.addf %119, %120 : vector<8x32xf32>
    %c0_44 = arith.constant 0 : index
    %c0_45 = arith.constant 0 : index
    %122 = vector.load %arg6[%c0_44, %c0_45] : memref<32x64xf32, #tpu.memory_space<vmem>>, vector<32x64xf32>
    %cst_46 = arith.constant dense<0.000000e+00> : vector<8x64xf32>
    %123 = tpu.matmul %121, %122, %cst_46 {dimension_numbers = #tpu.dot_dimension_numbers<[1], [0], [0], [1], [0, 0, 1, 1], [], []>} : vector<8x32xf32>, vector<32x64xf32>, vector<8x64xf32> -> vector<8x64xf32>
    %c0_47 = arith.constant 0 : index
    %c0_48 = arith.constant 0 : index
    %124 = vector.load %arg7[%c0_47, %c0_48] : memref<1x64xf32, #tpu.memory_space<vmem>>, vector<1x64xf32>
    %125 = vector.broadcast %124 : vector<1x64xf32> to vector<8x64xf32>
    %126 = arith.addf %123, %125 : vector<8x64xf32>
    %cst_49 = arith.constant 0.000000e+00 : f32
    %127 = vector.broadcast %cst_49 : f32 to vector<8x64xf32>
    %128 = arith.maximumf %126, %127 : vector<8x64xf32>
    %c0_50 = arith.constant 0 : index
    %c0_51 = arith.constant 0 : index
    %129 = vector.load %arg8[%c0_50, %c0_51] : memref<64x32xf32, #tpu.memory_space<vmem>>, vector<64x32xf32>
    %cst_52 = arith.constant dense<0.000000e+00> : vector<8x32xf32>
    %130 = tpu.matmul %128, %129, %cst_52 {dimension_numbers = #tpu.dot_dimension_numbers<[1], [0], [0], [1], [0, 0, 1, 1], [], []>} : vector<8x64xf32>, vector<64x32xf32>, vector<8x32xf32> -> vector<8x32xf32>
    %c0_53 = arith.constant 0 : index
    %c0_54 = arith.constant 0 : index
    %131 = vector.load %arg9[%c0_53, %c0_54] : memref<1x32xf32, #tpu.memory_space<vmem>>, vector<1x32xf32>
    %132 = vector.broadcast %131 : vector<1x32xf32> to vector<8x32xf32>
    %133 = arith.addf %130, %132 : vector<8x32xf32>
    %134 = arith.addf %121, %133 : vector<8x32xf32>
    %c0_55 = arith.constant 0 : index
    %c0_56 = arith.constant 0 : index
    %135 = vector.load %arg12[%c0_55, %c0_56] : memref<1x32xf32, #tpu.memory_space<vmem>>, vector<1x32xf32>
    %c0_57 = arith.constant 0 : index
    %c0_58 = arith.constant 0 : index
    %136 = vector.load %arg13[%c0_57, %c0_58] : memref<1x32xf32, #tpu.memory_space<vmem>>, vector<1x32xf32>
    %cst_59 = arith.constant dense<0.000000e+00> : vector<8xf32>
    %137 = vector.multi_reduction <add>, %134, %cst_59 [1] : vector<8x32xf32> to vector<8xf32>
    %138 = vector.shape_cast %137 : vector<8xf32> to vector<8x1xf32>
    %cst_60 = arith.constant 3.200000e+01 : f32
    %139 = vector.broadcast %cst_60 : f32 to vector<8x1xf32>
    %140 = arith.divf %138, %139 : vector<8x1xf32>
    %141 = vector.broadcast %140 : vector<8x1xf32> to vector<8x32xf32>
    %142 = arith.subf %134, %141 : vector<8x32xf32>
    %143 = arith.mulf %142, %142 : vector<8x32xf32>
    %cst_61 = arith.constant dense<0.000000e+00> : vector<8xf32>
    %144 = vector.multi_reduction <add>, %143, %cst_61 [1] : vector<8x32xf32> to vector<8xf32>
    %145 = vector.shape_cast %144 : vector<8xf32> to vector<8x1xf32>
    %cst_62 = arith.constant 3.200000e+01 : f32
    %146 = vector.broadcast %cst_62 : f32 to vector<8x1xf32>
    %147 = arith.divf %145, %146 : vector<8x1xf32>
    %148 = vector.broadcast %140 : vector<8x1xf32> to vector<8x32xf32>
    %149 = arith.subf %134, %148 : vector<8x32xf32>
    %cst_63 = arith.constant 9.99999974E-6 : f32
    %150 = vector.broadcast %cst_63 : f32 to vector<8x1xf32>
    %151 = arith.addf %147, %150 : vector<8x1xf32>
    %152 = math.rsqrt %151 : vector<8x1xf32>
    %153 = vector.broadcast %152 : vector<8x1xf32> to vector<8x32xf32>
    %154 = arith.mulf %149, %153 : vector<8x32xf32>
    %155 = vector.broadcast %135 : vector<1x32xf32> to vector<8x32xf32>
    %156 = arith.mulf %154, %155 : vector<8x32xf32>
    %157 = vector.broadcast %136 : vector<1x32xf32> to vector<8x32xf32>
    %158 = arith.addf %156, %157 : vector<8x32xf32>
    %159 = vector.shape_cast %158 : vector<8x32xf32> to vector<1x8x32xf32>
    %c0_64 = arith.constant 0 : index
    %c0_65 = arith.constant 0 : index
    %c0_66 = arith.constant 0 : index
    %160 = vector.load %arg14[%c0_64, %c0_65, %c0_66] : memref<1x8x32xf32, #tpu.memory_space<vmem>>, vector<1x8x32xf32>
    tpu.vector_store %arg14[%c0_64, %c0_65, %c0_66], %159 {strides = array<i32>} : memref<1x8x32xf32, #tpu.memory_space<vmem>>, vector<1x8x32xf32>,
    return
  }
  func.func @transform_0(%arg0: i32) -> (i32, i32, i32) {
    %c0_i32 = arith.constant 0 : i32
    %c0_i32_0 = arith.constant 0 : i32
    %c0_i32_1 = arith.constant 0 : i32
    return %arg0, %c0_i32, %c0_i32_0 : i32, i32, i32
  }
  func.func @transform_1(%arg0: i32) -> (i32, i32) {
    %c0_i32 = arith.constant 0 : i32
    %c0_i32_0 = arith.constant 0 : i32
    %c0_i32_1 = arith.constant 0 : i32
    return %c0_i32, %c0_i32_0 : i32, i32
  }
  func.func @transform_2(%arg0: i32) -> (i32, i32) {
    %c0_i32 = arith.constant 0 : i32
    %c0_i32_0 = arith.constant 0 : i32
    %c0_i32_1 = arith.constant 0 : i32
    return %c0_i32, %c0_i32_0 : i32, i32
  }
  func.func @transform_3(%arg0: i32) -> (i32, i32) {
    %c0_i32 = arith.constant 0 : i32
    %c0_i32_0 = arith.constant 0 : i32
    %c0_i32_1 = arith.constant 0 : i32
    return %c0_i32, %c0_i32_0 : i32, i32
  }
  func.func @transform_4(%arg0: i32) -> (i32, i32) {
    %c0_i32 = arith.constant 0 : i32
    %c0_i32_0 = arith.constant 0 : i32
    %c0_i32_1 = arith.constant 0 : i32
    return %c0_i32, %c0_i32_0 : i32, i32
  }
  func.func @transform_5(%arg0: i32) -> (i32, i32) {
    %c0_i32 = arith.constant 0 : i32
    %c0_i32_0 = arith.constant 0 : i32
    %c0_i32_1 = arith.constant 0 : i32
    return %c0_i32, %c0_i32_0 : i32, i32
  }
  func.func @transform_6(%arg0: i32) -> (i32, i32) {
    %c0_i32 = arith.constant 0 : i32
    %c0_i32_0 = arith.constant 0 : i32
    %c0_i32_1 = arith.constant 0 : i32
    return %c0_i32, %c0_i32_0 : i32, i32
  }
  func.func @transform_7(%arg0: i32) -> (i32, i32) {
    %c0_i32 = arith.constant 0 : i32
    %c0_i32_0 = arith.constant 0 : i32
    %c0_i32_1 = arith.constant 0 : i32
    return %c0_i32, %c0_i32_0 : i32, i32
  }
  func.func @transform_8(%arg0: i32) -> (i32, i32) {
    %c0_i32 = arith.constant 0 : i32
    %c0_i32_0 = arith.constant 0 : i32
    %c0_i32_1 = arith.constant 0 : i32
    return %c0_i32, %c0_i32_0 : i32, i32
  }
  func.func @transform_9(%arg0: i32) -> (i32, i32) {
    %c0_i32 = arith.constant 0 : i32
    %c0_i32_0 = arith.constant 0 : i32
    %c0_i32_1 = arith.constant 0 : i32
    return %c0_i32, %c0_i32_0 : i32, i32
  }
  func.func @transform_10(%arg0: i32) -> (i32, i32) {
    %c0_i32 = arith.constant 0 : i32
    %c0_i32_0 = arith.constant 0 : i32
    %c0_i32_1 = arith.constant 0 : i32
    return %c0_i32, %c0_i32_0 : i32, i32
  }
  func.func @transform_11(%arg0: i32) -> (i32, i32) {
    %c0_i32 = arith.constant 0 : i32
    %c0_i32_0 = arith.constant 0 : i32
    %c0_i32_1 = arith.constant 0 : i32
    return %c0_i32, %c0_i32_0 : i32, i32
  }
  func.func @transform_12(%arg0: i32) -> (i32, i32) {
    %c0_i32 = arith.constant 0 : i32
    %c0_i32_0 = arith.constant 0 : i32
    %c0_i32_1 = arith.constant 0 : i32
    return %c0_i32, %c0_i32_0 : i32, i32
  }
  func.func @transform_13(%arg0: i32) -> (i32, i32, i32) {
    %c0_i32 = arith.constant 0 : i32
    %c0_i32_0 = arith.constant 0 : i32
    %c0_i32_1 = arith.constant 0 : i32
    return %arg0, %c0_i32, %c0_i32_0 : i32, i32, i32
  }
}

</mosaic_0001>

<llo_original>
// kernel: surrogate_transformer_block.1
$region0: #{surrogate_transformer_block.1}
  #allocation0 [shape = 'u32[]', space=smem, size = 0x4, offset = 0x4, fixed_abs, tag = 'smem constant byte address 0x4 - core index']
  #allocation1 [shape = 'u32[144,128]{1,0:T(1,128)}', space=vmem, size = 0x12000, scoped, tag = 'internal scratch']
  %s0 = inlined_call_operand.vmem [shape: f32[2,8,32], index: 0, kind: input, shape index: {}]
  %s1 = inlined_call_operand.vmem [shape: f32[32,96], index: 1, kind: input, shape index: {}]
  %s2 = inlined_call_operand.vmem [shape: f32[1,96], index: 2, kind: input, shape index: {}]
  %s3 = inlined_call_operand.vmem [shape: f32[32,32], index: 3, kind: input, shape index: {}]
  %s4 = inlined_call_operand.vmem [shape: f32[1,32], index: 4, kind: input, shape index: {}]
  %s5 = inlined_call_operand.vmem [shape: f32[32,64], index: 5, kind: input, shape index: {}]
  %s6 = inlined_call_operand.vmem [shape: f32[1,64], index: 6, kind: input, shape index: {}]
  %s7 = inlined_call_operand.vmem [shape: f32[64,32], index: 7, kind: input, shape index: {}]
  %s8 = inlined_call_operand.vmem [shape: f32[1,32], index: 8, kind: input, shape index: {}]
  %s9 = inlined_call_operand.vmem [shape: f32[1,32], index: 9, kind: input, shape index: {}]
  %s10 = inlined_call_operand.vmem [shape: f32[1,32], index: 10, kind: input, shape index: {}]
  %s11 = inlined_call_operand.vmem [shape: f32[1,32], index: 11, kind: input, shape index: {}]
  %s12 = inlined_call_operand.vmem [shape: f32[1,32], index: 12, kind: input, shape index: {}]
  %s13 = inlined_call_operand.hbm [shape: f32[2,8,32], index: 13, kind: output, shape index: {}]
  %s14 = sld [smem:[#allocation0]]
  $region85: #{surrogate_transformer_block.1} parent=0
    _
  %s16 = ssub.s32 1, %s14
  %s17 = scalar_select 0, %s16, %s14
  $region1: #{surrogate_transformer_block.1} parent=0
    #allocation2 [shape = 'u8[8192]{0}', space=vmem, size = 0x2000, scoped, tag = 'output window, operand 0']
    #allocation3 [shape = 's32[2]{0}', space=sflag, size = 0x8, scoped, tag = 'scoped memory for surrogate_transformer_block.1']
    %18 = vsyncpa [#allocation3], 0
    %s19 = scalar_lea.sflag [#allocation3], 1
    %20 = vsyncpa %s19, 0
    loop: start=0, step=1, limit=4
    $region2: #{surrogate_transformer_block.1} parent=1 // loop_pre_header
      _
    $region3: #{surrogate_transformer_block.1} parent=1 // loop_header
      %s22 = sphi 0, %s26
      %p23 = scmp.ge.s32.totalorder %s22, 4
      %s32 = sphi 0, %s34
      %s35 = sphi 0, %s32
      %s36 = sphi 0, %s35
      %s52 = sphi 0, %s36
      %s56 = sphi 0, %s56
      %s58 = sphi 0, %s56
      %s59 = sphi 0, %s58
      %s73 = sphi 0, %s59
      %s77 = sphi 0, %s77
      %s79 = sphi 0, %s77
      %s80 = sphi 0, %s79
      %s94 = sphi 0, %s80
      %s98 = sphi 0, %s98
      %s100 = sphi 0, %s98
      %s101 = sphi 0, %s100
      %s115 = sphi 0, %s101
      %s119 = sphi 0, %s119
      %s121 = sphi 0, %s119
      %s122 = sphi 0, %s121
      %s136 = sphi 0, %s122
      %s140 = sphi 0, %s140
      %s142 = sphi 0, %s140
      %s143 = sphi 0, %s142
      %s157 = sphi 0, %s143
      %s161 = sphi 0, %s161
      %s163 = sphi 0, %s161
      %s164 = sphi 0, %s163
      %s178 = sphi 0, %s164
      %s182 = sphi 0, %s182
      %s184 = sphi 0, %s182
      %s185 = sphi 0, %s184
      %s199 = sphi 0, %s185
      %s203 = sphi 0, %s203
      %s205 = sphi 0, %s203
      %s206 = sphi 0, %s205
      %s220 = sphi 0, %s206
      %s224 = sphi 0, %s224
      %s226 = sphi 0, %s224
      %s227 = sphi 0, %s226
      %s241 = sphi 0, %s227
      %s245 = sphi 0, %s245
      %s247 = sphi 0, %s245
      %s248 = sphi 0, %s247
      %s262 = sphi 0, %s248
      %s266 = sphi 0, %s266
      %s268 = sphi 0, %s266
      %s269 = sphi 0, %s268
      %s283 = sphi 0, %s269
      %s287 = sphi 0, %s287
      %s289 = sphi 0, %s287
      %s290 = sphi 0, %s289
      %s304 = sphi 0, %s290
      %s310 = sphi 0, %s312
      %s313 = sphi 0, %s310
      %s314 = sphi 0, %s313
      %s330 = sphi 0, %s314
    $region4: #{surrogate_transformer_block.1} parent=1 // loop_header_branch
      %25 = sbr.rel (%p23) target = $region8
    $region5: #{surrogate_transformer_block.1} parent=1 // loop_body
      %s27 = ssub.s32 %s22, 1
      %s28 = ssub.s32 %s22, 2
      %s29 = sadd.s32 %s22, 1
      %s30 = ssub.s32 %s22, %s29
      %p31 = scmp.eq.s32.totalorder %s30, 0
      %s33 = sadd.s32 %s32, 1
      %s34 = scalar_select %p31, %s32, %s33
      %p37 = pneg %p31
      %p38 = scmp.eq.s32.totalorder %s22, 1
      %p39 = por %p37, %p38
      %p40 = scmp.ne.s32.totalorder %s32, %s35
      %p41 = scmp.eq.s32.totalorder %s22, 0
      %p42 = por %p40, %p41
      %p43 = scmp.ne.s32.totalorder %s32, %s35
      %p44 = scmp.eq.s32.totalorder %s27, 1
      %p45 = por %p43, %p44
      %p46 = scmp.ne.s32.totalorder %s35, %s36
      %p47 = scmp.eq.s32.totalorder %s27, 0
      %p48 = por %p46, %p47
      %p49 = scmp.ne.s32.totalorder %s35, %s36
      %p50 = scmp.eq.s32.totalorder %s28, 1
      %p51 = por %p49, %p50
      %p53 = scmp.ne.s32.totalorder %s36, %s52
      %p54 = scmp.eq.s32.totalorder %s28, 0
      %p55 = por %p53, %p54
      %s57 = sadd.s32 %s56, 1
      %p60 = scmp.eq.s32.totalorder %s22, 1
      %p61 = scmp.ne.s32.totalorder %s56, %s58
      %p62 = scmp.eq.s32.totalorder %s22, 0
      %p63 = por %p61, %p62
      %p64 = scmp.ne.s32.totalorder %s56, %s58
      %p65 = scmp.eq.s32.totalorder %s27, 1
      %p66 = por %p64, %p65
      %p67 = scmp.ne.s32.totalorder %s58, %s59
      %p68 = scmp.eq.s32.totalorder %s27, 0
      %p69 = por %p67, %p68
      %p70 = scmp.ne.s32.totalorder %s58, %s59
      %p71 = scmp.eq.s32.totalorder %s28, 1
      %p72 = por %p70, %p71
      %p74 = scmp.ne.s32.totalorder %s59, %s73
      %p75 = scmp.eq.s32.totalorder %s28, 0
      %p76 = por %p74, %p75
      %s78 = sadd.s32 %s77, 1
      %p81 = scmp.eq.s32.totalorder %s22, 1
      %p82 = scmp.ne.s32.totalorder %s77, %s79
      %p83 = scmp.eq.s32.totalorder %s22, 0
      %p84 = por %p82, %p83
      %p85 = scmp.ne.s32.totalorder %s77, %s79
      %p86 = scmp.eq.s32.totalorder %s27, 1
      %p87 = por %p85, %p86
      %p88 = scmp.ne.s32.totalorder %s79, %s80
      %p89 = scmp.eq.s32.totalorder %s27, 0
      %p90 = por %p88, %p89
      %p91 = scmp.ne.s32.totalorder %s79, %s80
      %p92 = scmp.eq.s32.totalorder %s28, 1
      %p93 = por %p91, %p92
      %p95 = scmp.ne.s32.totalorder %s80, %s94
      %p96 = scmp.eq.s32.totalorder %s28, 0
      %p97 = por %p95, %p96
      %s99 = sadd.s32 %s98, 1
      %p102 = scmp.eq.s32.totalorder %s22, 1
      %p103 = scmp.ne.s32.totalorder %s98, %s100
      %p104 = scmp.eq.s32.totalorder %s22, 0
      %p105 = por %p103, %p104
      %p106 = scmp.ne.s32.totalorder %s98, %s100
      %p107 = scmp.eq.s32.totalorder %s27, 1
      %p108 = por %p106, %p107
      %p109 = scmp.ne.s32.totalorder %s100, %s101
      %p110 = scmp.eq.s32.totalorder %s27, 0
      %p111 = por %p109, %p110
      %p112 = scmp.ne.s32.totalorder %s100, %s101
      %p113 = scmp.eq.s32.totalorder %s28, 1
      %p114 = por %p112, %p113
      %p116 = scmp.ne.s32.totalorder %s101, %s115
      %p117 = scmp.eq.s32.totalorder %s28, 0
      %p118 = por %p116, %p117
      %s120 = sadd.s32 %s119, 1
      %p123 = scmp.eq.s32.totalorder %s22, 1
      %p124 = scmp.ne.s32.totalorder %s119, %s121
      %p125 = scmp.eq.s32.totalorder %s22, 0
      %p126 = por %p124, %p125
      %p127 = scmp.ne.s32.totalorder %s119, %s121
      %p128 = scmp.eq.s32.totalorder %s27, 1
      %p129 = por %p127, %p128
      %p130 = scmp.ne.s32.totalorder %s121, %s122
      %p131 = scmp.eq.s32.totalorder %s27, 0
      %p132 = por %p130, %p131
      %p133 = scmp.ne.s32.totalorder %s121, %s122
      %p134 = scmp.eq.s32.totalorder %s28, 1
      %p135 = por %p133, %p134
      %p137 = scmp.ne.s32.totalorder %s122, %s136
      %p138 = scmp.eq.s32.totalorder %s28, 0
      %p139 = por %p137, %p138
      %s141 = sadd.s32 %s140, 1
      %p144 = scmp.eq.s32.totalorder %s22, 1
      %p145 = scmp.ne.s32.totalorder %s140, %s142
      %p146 = scmp.eq.s32.totalorder %s22, 0
      %p147 = por %p145, %p146
      %p148 = scmp.ne.s32.totalorder %s140, %s142
      %p149 = scmp.eq.s32.totalorder %s27, 1
      %p150 = por %p148, %p149
      %p151 = scmp.ne.s32.totalorder %s142, %s143
      %p152 = scmp.eq.s32.totalorder %s27, 0
      %p153 = por %p151, %p152
      %p154 = scmp.ne.s32.totalorder %s142, %s143
      %p155 = scmp.eq.s32.totalorder %s28, 1
      %p156 = por %p154, %p155
      %p158 = scmp.ne.s32.totalorder %s143, %s157
      %p159 = scmp.eq.s32.totalorder %s28, 0
      %p160 = por %p158, %p159
      %s162 = sadd.s32 %s161, 1
      %p165 = scmp.eq.s32.totalorder %s22, 1
      %p166 = scmp.ne.s32.totalorder %s161, %s163
      %p167 = scmp.eq.s32.totalorder %s22, 0
      %p168 = por %p166, %p167
      %p169 = scmp.ne.s32.totalorder %s161, %s163
      %p170 = scmp.eq.s32.totalorder %s27, 1
      %p171 = por %p169, %p170
      %p172 = scmp.ne.s32.totalorder %s163, %s164
      %p173 = scmp.eq.s32.totalorder %s27, 0
      %p174 = por %p172, %p173
      %p175 = scmp.ne.s32.totalorder %s163, %s164
      %p176 = scmp.eq.s32.totalorder %s28, 1
      %p177 = por %p175, %p176
      %p179 = scmp.ne.s32.totalorder %s164, %s178
      %p180 = scmp.eq.s32.totalorder %s28, 0
      %p181 = por %p179, %p180
      %s183 = sadd.s32 %s182, 1
      %p186 = scmp.eq.s32.totalorder %s22, 1
      %p187 = scmp.ne.s32.totalorder %s182, %s184
      %p188 = scmp.eq.s32.totalorder %s22, 0
      %p189 = por %p187, %p188
      %p190 = scmp.ne.s32.totalorder %s182, %s184
      %p191 = scmp.eq.s32.totalorder %s27, 1
      %p192 = por %p190, %p191
      %p193 = scmp.ne.s32.totalorder %s184, %s185
      %p194 = scmp.eq.s32.totalorder %s27, 0
      %p195 = por %p193, %p194
      %p196 = scmp.ne.s32.totalorder %s184, %s185
      %p197 = scmp.eq.s32.totalorder %s28, 1
      %p198 = por %p196, %p197
      %p200 = scmp.ne.s32.totalorder %s185, %s199
      %p201 = scmp.eq.s32.totalorder %s28, 0
      %p202 = por %p200, %p201
      %s204 = sadd.s32 %s203, 1
      %p207 = scmp.eq.s32.totalorder %s22, 1
      %p208 = scmp.ne.s32.totalorder %s203, %s205
      %p209 = scmp.eq.s32.totalorder %s22, 0
      %p210 = por %p208, %p209
      %p211 = scmp.ne.s32.totalorder %s203, %s205
      %p212 = scmp.eq.s32.totalorder %s27, 1
      %p213 = por %p211, %p212
      %p214 = scmp.ne.s32.totalorder %s205, %s206
      %p215 = scmp.eq.s32.totalorder %s27, 0
      %p216 = por %p214, %p215
      %p217 = scmp.ne.s32.totalorder %s205, %s206
      %p218 = scmp.eq.s32.totalorder %s28, 1
      %p219 = por %p217, %p218
      %p221 = scmp.ne.s32.totalorder %s206, %s220
      %p222 = scmp.eq.s32.totalorder %s28, 0
      %p223 = por %p221, %p222
      %s225 = sadd.s32 %s224, 1
      %p228 = scmp.eq.s32.totalorder %s22, 1
      %p229 = scmp.ne.s32.totalorder %s224, %s226
      %p230 = scmp.eq.s32.totalorder %s22, 0
      %p231 = por %p229, %p230
      %p232 = scmp.ne.s32.totalorder %s224, %s226
      %p233 = scmp.eq.s32.totalorder %s27, 1
      %p234 = por %p232, %p233
      %p235 = scmp.ne.s32.totalorder %s226, %s227
      %p236 = scmp.eq.s32.totalorder %s27, 0
      %p237 = por %p235, %p236
      %p238 = scmp.ne.s32.totalorder %s226, %s227
      %p239 = scmp.eq.s32.totalorder %s28, 1
      %p240 = por %p238, %p239
      %p242 = scmp.ne.s32.totalorder %s227, %s241
      %p243 = scmp.eq.s32.totalorder %s28, 0
      %p244 = por %p242, %p243
      %s246 = sadd.s32 %s245, 1
      %p249 = scmp.eq.s32.totalorder %s22, 1
      %p250 = scmp.ne.s32.totalorder %s245, %s247
      %p251 = scmp.eq.s32.totalorder %s22, 0
      %p252 = por %p250, %p251
      %p253 = scmp.ne.s32.totalorder %s245, %s247
      %p254 = scmp.eq.s32.totalorder %s27, 1
      %p255 = por %p253, %p254
      %p256 = scmp.ne.s32.totalorder %s247, %s248
      %p257 = scmp.eq.s32.totalorder %s27, 0
      %p258 = por %p256, %p257
      %p259 = scmp.ne.s32.totalorder %s247, %s248
      %p260 = scmp.eq.s32.totalorder %s28, 1
      %p261 = por %p259, %p260
      %p263 = scmp.ne.s32.totalorder %s248, %s262
      %p264 = scmp.eq.s32.totalorder %s28, 0
      %p265 = por %p263, %p264
      %s267 = sadd.s32 %s266, 1
      %p270 = scmp.eq.s32.totalorder %s22, 1
      %p271 = scmp.ne.s32.totalorder %s266, %s268
      %p272 = scmp.eq.s32.totalorder %s22, 0
      %p273 = por %p271, %p272
      %p274 = scmp.ne.s32.totalorder %s266, %s268
      %p275 = scmp.eq.s32.totalorder %s27, 1
      %p276 = por %p274, %p275
      %p277 = scmp.ne.s32.totalorder %s268, %s269
      %p278 = scmp.eq.s32.totalorder %s27, 0
      %p279 = por %p277, %p278
      %p280 = scmp.ne.s32.totalorder %s268, %s269
      %p281 = scmp.eq.s32.totalorder %s28, 1
      %p282 = por %p280, %p281
      %p284 = scmp.ne.s32.totalorder %s269, %s283
      %p285 = scmp.eq.s32.totalorder %s28, 0
      %p286 = por %p284, %p285
      %s288 = sadd.s32 %s287, 1
      %p291 = scmp.eq.s32.totalorder %s22, 1
      %p292 = scmp.ne.s32.totalorder %s287, %s289
      %p293 = scmp.eq.s32.totalorder %s22, 0
      %p294 = por %p292, %p293
      %p295 = scmp.ne.s32.totalorder %s287, %s289
      %p296 = scmp.eq.s32.totalorder %s27, 1
      %p297 = por %p295, %p296
      %p298 = scmp.ne.s32.totalorder %s289, %s290
      %p299 = scmp.eq.s32.totalorder %s27, 0
      %p300 = por %p298, %p299
      %p301 = scmp.ne.s32.totalorder %s289, %s290
      %p302 = scmp.eq.s32.totalorder %s28, 1
      %p303 = por %p301, %p302
      %p305 = scmp.ne.s32.totalorder %s290, %s304
      %p306 = scmp.eq.s32.totalorder %s28, 0
      %p307 = por %p305, %p306
      %s308 = ssub.s32 %s22, %s29
      %p309 = scmp.eq.s32.totalorder %s308, 0
      %s311 = sadd.s32 %s310, 1
      %s312 = scalar_select %p309, %s310, %s311
      %p315 = pneg %p309
      %p316 = scmp.eq.s32.totalorder %s22, 1
      %p317 = por %p315, %p316
      %p318 = scmp.ne.s32.totalorder %s310, %s313
      %p319 = scmp.eq.s32.totalorder %s22, 0
      %p320 = por %p318, %p319
      %p321 = scmp.ne.s32.totalorder %s310, %s313
      %p322 = scmp.eq.s32.totalorder %s27, 1
      %p323 = por %p321, %p322
      %p324 = scmp.ne.s32.totalorder %s313, %s314
      %p325 = scmp.eq.s32.totalorder %s27, 0
      %p326 = por %p324, %p325
      %p327 = scmp.ne.s32.totalorder %s313, %s314
      %p328 = scmp.eq.s32.totalorder %s28, 1
      %p329 = por %p327, %p328
      %p331 = scmp.ne.s32.totalorder %s314, %s330
      %p332 = scmp.eq.s32.totalorder %s28, 0
      %p333 = por %p331, %p332
      %p334 = scmp.le.s32.totalorder 1, %s22
      %p335 = scmp.lt.s32.totalorder %s22, 3
      %p336 = pnand %p334, %p335
      %p337 = pneg %p336
      // Predicated region
      $region9: #{surrogate_transformer_block.1} parent=5 // pred_check
        _
      $region10: #{surrogate_transformer_block.1} parent=5 // pred_check_branch
        %339 = sbr.rel (%p336) target = $region12
      $region11: #{surrogate_transformer_block.1} parent=5 // pred_region
        %s340 = ssub.s32 %s22, 1
        // Predicated region
        $region13: #{surrogate_transformer_block.1} parent=11 // pred_check
          %p341 = pneg %p69
        $region14: #{surrogate_transformer_block.1} parent=11 // pred_check_branch
          %343 = sbr.rel (%p341) target = $region16
        $region15: #{surrogate_transformer_block.1} parent=11 // pred_region
          _
        $region16: #{surrogate_transformer_block.1} parent=11 // pred_fallthru
          _
        // Predicated region
        $region17: #{surrogate_transformer_block.1} parent=11 // pred_check
          %p344 = pneg %p90
        $region18: #{surrogate_transformer_block.1} parent=11 // pred_check_branch
          %346 = sbr.rel (%p344) target = $region20
        $region19: #{surrogate_transformer_block.1} parent=11 // pred_region
          _
        $region20: #{surrogate_transformer_block.1} parent=11 // pred_fallthru
          _
        // Predicated region
        $region21: #{surrogate_transformer_block.1} parent=11 // pred_check
          %p347 = pneg %p111
        $region22: #{surrogate_transformer_block.1} parent=11 // pred_check_branch
          %349 = sbr.rel (%p347) target = $region24
        $region23: #{surrogate_transformer_block.1} parent=11 // pred_region
          _
        $region24: #{surrogate_transformer_block.1} parent=11 // pred_fallthru
          _
        // Predicated region
        $region25: #{surrogate_transformer_block.1} parent=11 // pred_check
          %p350 = pneg %p132
        $region26: #{surrogate_transformer_block.1} parent=11 // pred_check_branch
          %352 = sbr.rel (%p350) target = $region28
        $region27: #{surrogate_transformer_block.1} parent=11 // pred_region
          _
        $region28: #{surrogate_transformer_block.1} parent=11 // pred_fallthru
          _
        // Predicated region
        $region29: #{surrogate_transformer_block.1} parent=11 // pred_check
          %p353 = pneg %p153
        $region30: #{surrogate_transformer_block.1} parent=11 // pred_check_branch
          %355 = sbr.rel (%p353) target = $region32
        $region31: #{surrogate_transformer_block.1} parent=11 // pred_region
          _
        $region32: #{surrogate_transformer_block.1} parent=11 // pred_fallthru
          _
        // Predicated region
        $region33: #{surrogate_transformer_block.1} parent=11 // pred_check
          %p356 = pneg %p174
        $region34: #{surrogate_transformer_block.1} parent=11 // pred_check_branch
          %358 = sbr.rel (%p356) target = $region36
        $region35: #{surrogate_transformer_block.1} parent=11 // pred_region
          _
        $region36: #{surrogate_transformer_block.1} parent=11 // pred_fallthru
          _
        // Predicated region
        $region37: #{surrogate_transformer_block.1} parent=11 // pred_check
          %p359 = pneg %p195
        $region38: #{surrogate_transformer_block.1} parent=11 // pred_check_branch
          %361 = sbr.rel (%p359) target = $region40
        $region39: #{surrogate_transformer_block.1} parent=11 // pred_region
          _
        $region40: #{surrogate_transformer_block.1} parent=11 // pred_fallthru
          _
        // Predicated region
        $region41: #{surrogate_transformer_block.1} parent=11 // pred_check
          %p362 = pneg %p216
        $region42: #{surrogate_transformer_block.1} parent=11 // pred_check_branch
          %364 = sbr.rel (%p362) target = $region44
        $region43: #{surrogate_transformer_block.1} parent=11 // pred_region
          _
        $region44: #{surrogate_transformer_block.1} parent=11 // pred_fallthru
          _
        // Predicated region
        $region45: #{surrogate_transformer_block.1} parent=11 // pred_check
          %p365 = pneg %p237
        $region46: #{surrogate_transformer_block.1} parent=11 // pred_check_branch
          %367 = sbr.rel (%p365) target = $region48
        $region47: #{surrogate_transformer_block.1} parent=11 // pred_region
          _
        $region48: #{surrogate_transformer_block.1} parent=11 // pred_fallthru
          _
        // Predicated region
        $region49: #{surrogate_transformer_block.1} parent=11 // pred_check
          %p368 = pneg %p258
        $region50: #{surrogate_transformer_block.1} parent=11 // pred_check_branch
          %370 = sbr.rel (%p368) target = $region52
        $region51: #{surrogate_transformer_block.1} parent=11 // pred_region
          _
        $region52: #{surrogate_transformer_block.1} parent=11 // pred_fallthru
          _
        // Predicated region
        $region53: #{surrogate_transformer_block.1} parent=11 // pred_check
          %p371 = pneg %p279
        $region54: #{surrogate_transformer_block.1} parent=11 // pred_check_branch
          %373 = sbr.rel (%p371) target = $region56
        $region55: #{surrogate_transformer_block.1} parent=11 // pred_region
          _
        $region56: #{surrogate_transformer_block.1} parent=11 // pred_fallthru
          _
        // Predicated region
        $region57: #{surrogate_transformer_block.1} parent=11 // pred_check
          %p374 = pneg %p300
        $region58: #{surrogate_transformer_block.1} parent=11 // pred_check_branch
          %376 = sbr.rel (%p374) target = $region60
        $region59: #{surrogate_transformer_block.1} parent=11 // pred_region
          _
        $region60: #{surrogate_transformer_block.1} parent=11 // pred_fallthru
          _
      $region12: #{surrogate_transformer_block.1} parent=5 // pred_fallthru
        _
      %p377 = scmp.lt.s32.totalorder %s22, 2
      // Predicated region
      $region61: #{surrogate_transformer_block.1} parent=5 // pred_check
        %p378 = pneg %p377
      $region62: #{surrogate_transformer_block.1} parent=5 // pred_check_branch
        %380 = sbr.rel (%p378) target = $region64
      $region63: #{surrogate_transformer_block.1} parent=5 // pred_region
        // Predicated region
        $region65: #{surrogate_transformer_block.1} parent=63 // pred_check
          %p381 = pneg %p42
        $region66: #{surrogate_transformer_block.1} parent=63 // pred_check_branch
          %383 = sbr.rel (%p381) target = $region68
        $region67: #{surrogate_transformer_block.1} parent=63 // pred_region
          %p384 = scmp.lt.s32.totalorder %s22, 1
          %s385 = scalar_select %p384, %s22, 1
          %s386 = smul.addr %s385, 8
          %s387 = scalar_lea.vmem %s0, %s386
        $region68: #{surrogate_transformer_block.1} parent=63 // pred_fallthru
          _
      $region64: #{surrogate_transformer_block.1} parent=5 // pred_fallthru
        _
      %p388 = scmp.le.s32.totalorder 1, %s22
      %p389 = scmp.lt.s32.totalorder %s22, 3
      %p390 = pnand %p388, %p389
      %p391 = pneg %p390
      // Predicated region
      $region69: #{surrogate_transformer_block.1} parent=5 // pred_check
        _
      $region70: #{surrogate_transformer_block.1} parent=5 // pred_check_branch
        %393 = sbr.rel (%p390) target = $region72
      $region71: #{surrogate_transformer_block.1} parent=5 // pred_region
        %s394 = ssub.s32 %s22, 1
        %p395 = scmp.lt.s32.totalorder %s27, 1
        %s396 = scalar_select %p395, %s27, 1
        %s397 = smul.addr %s396, 8
        %s398 = scalar_lea.vmem %s0, %s397
        %p399 = pneg %p48
        %p400 = pneg %p45
        %p401 = pneg %p69
        %p402 = pneg %p66
        %p403 = pneg %p90
        %p404 = pneg %p87
        %p405 = pneg %p111
        %p406 = pneg %p108
        %p407 = pneg %p132
        %p408 = pneg %p129
        %p409 = pneg %p153
        %p410 = pneg %p150
        %p411 = pneg %p174
        %p412 = pneg %p171
        %p413 = pneg %p195
        %p414 = pneg %p192
        %p415 = pneg %p216
        %p416 = pneg %p213
        %p417 = pneg %p237
        %p418 = pneg %p234
        %p419 = pneg %p258
        %p420 = pneg %p255
        %p421 = pneg %p279
        %p422 = pneg %p276
        %p423 = pneg %p300
        %p424 = pneg %p297
        %p425 = pneg %p326
        %p426 = pneg %p323
        %s427 = sand.u32 %s313, 1
        %s428 = scalar_lea.sflag [#allocation3], %s427
        %s429 = sand.u32 %s313, 1
        %s430 = smul.addr %s429, 8
        %s431 = scalar_lea.vmem [#allocation2], %s430
        %p432 = scmp.lt.s32.totalorder %s27, 1
        %s433 = scalar_select %p432, %s27, 1
        %s434 = smul.addr %s433, 8
        %s435 = scalar_lea.vmem %s0, %s434
        %v436 = vld [vmem:[%s435] sm:$0xff]
        %v437 = vld [vmem:[%s1] sm:$0xff]
        %v438 = vld [vmem:[%s1 + $0x8] sm:$0xff]
        %v439 = vld [vmem:[%s1 + $0x10] sm:$0xff]
        %v440 = vld [vmem:[%s1 + $0x18] sm:$0xff]
        %v441 = vld [vmem:[%s2] sm:$0x1]
        %v443 = vlaneseq
        %v444 = vshrl.u32 %v443, 7
        %v445 = vsub.s32 0, %v444
        %v446 = vrot.slane %v441, %v445
        %vm448 = vcmask 261120
        %v450 = vsel %vm448, %v436, 0
        %452 = vmatprep.subr.mxu0 0.0
        %453 = vmatpush1.msra.mxu0 %v437
        %454 = vmatprep.subr.mxu0 0.0
        %455 = vmatpush1.msra.mxu0 %v438
        %456 = vmatprep.subr.mxu0 0.0
        %457 = vmatpush1.msra.mxu0 %v439
        %458 = vmatprep.subr.mxu0 0.0
        %459 = vmatpush1.msra.mxu0 %v440
        %460 = vmatprep.subr.mxu0 0.0
        %461 = vmatpush1.msra.mxu0 0.0
        %462 = vmatprep.subr.mxu0 0.0
        %463 = vmatpush1.msra.mxu0 0.0
        %464 = vmatprep.subr.mxu0 0.0
        %465 = vmatpush1.msra.mxu0 0.0
        %466 = vmatprep.subr.mxu0 0.0
        %467 = vmatpush1.msra.mxu0 0.0
        %468 = vmatprep.subr.mxu0 0.0
        %469 = vmatpush1.msra.mxu0 0.0
        %470 = vmatprep.subr.mxu0 0.0
        %471 = vmatpush1.msra.mxu0 0.0
        %472 = vmatprep.subr.mxu0 0.0
        %473 = vmatpush1.msra.mxu0 0.0
        %474 = vmatprep.subr.mxu0 0.0
        %475 = vmatpush1.msra.mxu0 0.0
        %476 = vmatprep.subr.mxu0 0.0
        %477 = vmatpush1.msra.mxu0 0.0
        %478 = vmatprep.subr.mxu0 0.0
        %479 = vmatpush1.msra.mxu0 0.0
        %480 = vmatprep.subr.mxu0 0.0
        %481 = vmatpush1.msra.mxu0 0.0
        %482 = vmatprep.subr.mxu0 0.0
        %483 = vmatpush1.msra.mxu0 0.0
        %484 = vmatprep.subr.mxu0 0.0
        %485 = vmatpush1.msra.mxu0 0.0
        %486 = vmatprep.subr.mxu0 0.0
        %487 = vmatpush1.msra.mxu0 0.0
        %488 = vmatprep.subr.mxu0 0.0
        %489 = vmatpush1.msra.mxu0 0.0
        %490 = vmatprep.subr.mxu0 0.0
        %491 = vmatpush1.msra.mxu0 0.0
        %492 = vmatprep.subr.mxu0 0.0
        %493 = vmatpush1.msra.mxu0 0.0
        %494 = vmatprep.subr.mxu0 0.0
        %495 = vmatpush1.msra.mxu0 0.0
        %496 = vmatprep.subr.mxu0 0.0
        %497 = vmatpush1.msra.mxu0 0.0
        %498 = vmatprep.subr.mxu0 0.0
        %499 = vmatpush1.msra.mxu0 0.0
        %500 = vmatprep.subr.mxu0 0.0
        %501 = vmatpush1.msra.mxu0 0.0
        %502 = vmatprep.subr.mxu0 0.0
        %503 = vmatpush1.msra.mxu0 0.0
        %504 = vmatprep.subr.mxu0 0.0
        %505 = vmatpush1.msra.mxu0 0.0
        %506 = vmatprep.subr.mxu0 0.0
        %507 = vmatpush1.msra.mxu0 0.0
        %508 = vmatprep.subr.mxu0 0.0
        %509 = vmatpush1.msra.mxu0 0.0
        %510 = vmatprep.subr.mxu0 0.0
        %511 = vmatpush1.msra.mxu0 0.0
        %512 = vmatprep.subr.mxu0 0.0
        %513 = vmatpush1.msra.mxu0 0.0
        %514 = vmatprep.subr.mxu0 0.0
        %515 = vmatpush1.msra.mxu0 0.0
        %516 = vmatprep.mubr.f32.mxu0 0.0
        %517 = vmatmul.mubr.f32.gmra.mrb[0].mxu0 %v450
        %v518 = vpop.f32.mrb[0].mxu0
        %v519 = vadd.f32 %v446, %v518
        %v520 = vpop.f32.mrb[0].mxu0
        %521 = vdwg.mxu0
        %v522 = vld [vmem:[%s3] sm:$0xff]
        %v523 = vld [vmem:[%s3 + $0x8] sm:$0xff]
        %v524 = vld [vmem:[%s3 + $0x10] sm:$0xff]
        %v525 = vld [vmem:[%s3 + $0x18] sm:$0xff]
        %527 = vrot.lane.b32.xlu0 %v519, 96
        %v528 = vpop.permute.xlu0 %527
        %vm529 = vcmask 64512
        %v530 = vsel %vm529, %v519, 0
        %v532 = vsel %vm529, %v528, 0
        %534 = vmatprep.subr.mxu0 0.0
        %535 = vmatpush1.xpose.msra.mxu0 %v532
        %536 = vmatprep.subr.mxu0 0.0
        %537 = vmatpush1.xpose.msra.mxu0 0.0
        %538 = vmatprep.subr.mxu0 0.0
        %539 = vmatpush1.xpose.msra.mxu0 0.0
        %540 = vmatprep.subr.mxu0 0.0
        %541 = vmatpush1.xpose.msra.mxu0 0.0
        %542 = vmatprep.subr.mxu0 0.0
        %543 = vmatpush1.xpose.msra.mxu0 0.0
        %544 = vmatprep.subr.mxu0 0.0
        %545 = vmatpush1.xpose.msra.mxu0 0.0
        %546 = vmatprep.subr.mxu0 0.0
        %547 = vmatpush1.xpose.msra.mxu0 0.0
        %548 = vmatprep.subr.mxu0 0.0
        %549 = vmatpush1.xpose.msra.mxu0 0.0
        %550 = vmatprep.subr.mxu0 0.0
        %551 = vmatpush1.xpose.msra.mxu0 0.0
        %552 = vmatprep.subr.mxu0 0.0
        %553 = vmatpush1.xpose.msra.mxu0 0.0
        %554 = vmatprep.subr.mxu0 0.0
        %555 = vmatpush1.xpose.msra.mxu0 0.0
        %556 = vmatprep.subr.mxu0 0.0
        %557 = vmatpush1.xpose.msra.mxu0 0.0
        %558 = vmatprep.subr.mxu0 0.0
        %559 = vmatpush1.xpose.msra.mxu0 0.0
        %560 = vmatprep.subr.mxu0 0.0
        %561 = vmatpush1.xpose.msra.mxu0 0.0
        %562 = vmatprep.subr.mxu0 0.0
        %563 = vmatpush1.xpose.msra.mxu0 0.0
        %564 = vmatprep.subr.mxu0 0.0
        %565 = vmatpush1.xpose.msra.mxu0 0.0
        %566 = vmatprep.subr.mxu0 0.0
        %567 = vmatpush1.xpose.msra.mxu0 0.0
        %568 = vmatprep.subr.mxu0 0.0
        %569 = vmatpush1.xpose.msra.mxu0 0.0
        %570 = vmatprep.subr.mxu0 0.0
        %571 = vmatpush1.xpose.msra.mxu0 0.0
        %572 = vmatprep.subr.mxu0 0.0
        %573 = vmatpush1.xpose.msra.mxu0 0.0
        %574 = vmatprep.subr.mxu0 0.0
        %575 = vmatpush1.xpose.msra.mxu0 0.0
        %576 = vmatprep.subr.mxu0 0.0
        %577 = vmatpush1.xpose.msra.mxu0 0.0
        %578 = vmatprep.subr.mxu0 0.0
        %579 = vmatpush1.xpose.msra.mxu0 0.0
        %580 = vmatprep.subr.mxu0 0.0
        %581 = vmatpush1.xpose.msra.mxu0 0.0
        %582 = vmatprep.subr.mxu0 0.0
        %583 = vmatpush1.xpose.msra.mxu0 0.0
        %584 = vmatprep.subr.mxu0 0.0
        %585 = vmatpush1.xpose.msra.mxu0 0.0
        %586 = vmatprep.subr.mxu0 0.0
        %587 = vmatpush1.xpose.msra.mxu0 0.0
        %588 = vmatprep.subr.mxu0 0.0
        %589 = vmatpush1.xpose.msra.mxu0 0.0
        %590 = vmatprep.subr.mxu0 0.0
        %591 = vmatpush1.xpose.msra.mxu0 0.0
        %592 = vmatprep.subr.mxu0 0.0
        %593 = vmatpush1.xpose.msra.mxu0 0.0
        %594 = vmatprep.subr.mxu0 0.0
        %595 = vmatpush1.xpose.msra.mxu0 0.0
        %596 = vmatprep.subr.mxu0 0.0
        %597 = vmatpush1.xpose.msra.mxu0 0.0
        %598 = vmatprep.mubr.f32.mxu0 0.0
        %599 = vmatmul.mubr.f32.gmra.mrb[0].mxu0 %v530
        %v600 = vpop.f32.mrb[0].mxu0
        %v601 = vadd.f32 0.0, %v600
        %v602 = vpop.f32.mrb[0].mxu0
        %603 = vdwg.mxu0
        %v604 = vmul.f32 %v601, 0.35355338
        %v605 = vsel %vm529, %v604, -inf
        %606 = vmax.xlane.f32.xlu0 %v605
        %v607 = vpop.xlane.xlu0 %606
        %v608 = vsub.f32 %v604, %v607
        %v609 = vmul.f32 %v608, 1.442695
        %v610 = vpow.pop %v609
        %v611 = vsel %vm529, %v610, 0.0
        %612 = vadd.xlane.f32.xlu0 %v611
        %v613 = vpop.xlane.xlu0 %612
        %v614 = vrcp.pop %v613
        %v615 = vmul.f32 %v610, %v614
        %616 = vrot.lane.b32.xlu0 %v519, 64
        %v617 = vpop.permute.xlu0 %616
        %v620 = vsel %vm529, %v615, 0
        %622 = vmatprep.subr.mxu0 0.0
        %623 = vmatpush1.msra.mxu0 %v617
        %624 = vmatprep.subr.mxu0 0.0
        %625 = vmatpush1.msra.mxu0 0.0
        %626 = vmatprep.subr.mxu0 0.0
        %627 = vmatpush1.msra.mxu0 0.0
        %628 = vmatprep.subr.mxu0 0.0
        %629 = vmatpush1.msra.mxu0 0.0
        %630 = vmatprep.subr.mxu0 0.0
        %631 = vmatpush1.msra.mxu0 0.0
        %632 = vmatprep.subr.mxu0 0.0
        %633 = vmatpush1.msra.mxu0 0.0
        %634 = vmatprep.subr.mxu0 0.0
        %635 = vmatpush1.msra.mxu0 0.0
        %636 = vmatprep.subr.mxu0 0.0
        %637 = vmatpush1.msra.mxu0 0.0
        %638 = vmatprep.subr.mxu0 0.0
        %639 = vmatpush1.msra.mxu0 0.0
        %640 = vmatprep.subr.mxu0 0.0
        %641 = vmatpush1.msra.mxu0 0.0
        %642 = vmatprep.subr.mxu0 0.0
        %643 = vmatpush1.msra.mxu0 0.0
        %644 = vmatprep.subr.mxu0 0.0
        %645 = vmatpush1.msra.mxu0 0.0
        %646 = vmatprep.subr.mxu0 0.0
        %647 = vmatpush1.msra.mxu0 0.0
        %648 = vmatprep.subr.mxu0 0.0
        %649 = vmatpush1.msra.mxu0 0.0
        %650 = vmatprep.subr.mxu0 0.0
        %651 = vmatpush1.msra.mxu0 0.0
        %652 = vmatprep.subr.mxu0 0.0
        %653 = vmatpush1.msra.mxu0 0.0
        %654 = vmatprep.subr.mxu0 0.0
        %655 = vmatpush1.msra.mxu0 0.0
        %656 = vmatprep.subr.mxu0 0.0
        %657 = vmatpush1.msra.mxu0 0.0
        %658 = vmatprep.subr.mxu0 0.0
        %659 = vmatpush1.msra.mxu0 0.0
        %660 = vmatprep.subr.mxu0 0.0
        %661 = vmatpush1.msra.mxu0 0.0
        %662 = vmatprep.subr.mxu0 0.0
        %663 = vmatpush1.msra.mxu0 0.0
        %664 = vmatprep.subr.mxu0 0.0
        %665 = vmatpush1.msra.mxu0 0.0
        %666 = vmatprep.subr.mxu0 0.0
        %667 = vmatpush1.msra.mxu0 0.0
        %668 = vmatprep.subr.mxu0 0.0
        %669 = vmatpush1.msra.mxu0 0.0
        %670 = vmatprep.subr.mxu0 0.0
        %671 = vmatpush1.msra.mxu0 0.0
        %672 = vmatprep.subr.mxu0 0.0
        %673 = vmatpush1.msra.mxu0 0.0
        %674 = vmatprep.subr.mxu0 0.0
        %675 = vmatpush1.msra.mxu0 0.0
        %676 = vmatprep.subr.mxu0 0.0
        %677 = vmatpush1.msra.mxu0 0.0
        %678 = vmatprep.subr.mxu0 0.0
        %679 = vmatpush1.msra.mxu0 0.0
        %680 = vmatprep.subr.mxu0 0.0
        %681 = vmatpush1.msra.mxu0 0.0
        %682 = vmatprep.subr.mxu0 0.0
        %683 = vmatpush1.msra.mxu0 0.0
        %684 = vmatprep.subr.mxu0 0.0
        %685 = vmatpush1.msra.mxu0 0.0
        %686 = vmatprep.mubr.f32.mxu0 0.0
        %687 = vmatmul.mubr.f32.gmra.mrb[0].mxu0 %v620
        %v688 = vpop.f32.mrb[0].mxu0
        %v689 = vadd.f32 0.0, %v688
        %v690 = vpop.f32.mrb[0].mxu0
        %691 = vdwg.mxu0
        %692 = vrot.lane.b32.xlu0 %v519, 120
        %v693 = vpop.permute.xlu0 %692
        %694 = vrot.lane.b32.xlu0 %v519, 88
        %v695 = vpop.permute.xlu0 %694
        %v696 = vsel %vm529, %v693, 0
        %v698 = vsel %vm529, %v695, 0
        %700 = vmatprep.subr.mxu0 0.0
        %701 = vmatpush1.xpose.msra.mxu0 %v698
        %702 = vmatprep.subr.mxu0 0.0
        %703 = vmatpush1.xpose.msra.mxu0 0.0
        %704 = vmatprep.subr.mxu0 0.0
        %705 = vmatpush1.xpose.msra.mxu0 0.0
        %706 = vmatprep.subr.mxu0 0.0
        %707 = vmatpush1.xpose.msra.mxu0 0.0
        %708 = vmatprep.subr.mxu0 0.0
        %709 = vmatpush1.xpose.msra.mxu0 0.0
        %710 = vmatprep.subr.mxu0 0.0
        %711 = vmatpush1.xpose.msra.mxu0 0.0
        %712 = vmatprep.subr.mxu0 0.0
        %713 = vmatpush1.xpose.msra.mxu0 0.0
        %714 = vmatprep.subr.mxu0 0.0
        %715 = vmatpush1.xpose.msra.mxu0 0.0
        %716 = vmatprep.subr.mxu0 0.0
        %717 = vmatpush1.xpose.msra.mxu0 0.0
        %718 = vmatprep.subr.mxu0 0.0
        %719 = vmatpush1.xpose.msra.mxu0 0.0
        %720 = vmatprep.subr.mxu0 0.0
        %721 = vmatpush1.xpose.msra.mxu0 0.0
        %722 = vmatprep.subr.mxu0 0.0
        %723 = vmatpush1.xpose.msra.mxu0 0.0
        %724 = vmatprep.subr.mxu0 0.0
        %725 = vmatpush1.xpose.msra.mxu0 0.0
        %726 = vmatprep.subr.mxu0 0.0
        %727 = vmatpush1.xpose.msra.mxu0 0.0
        %728 = vmatprep.subr.mxu0 0.0
        %729 = vmatpush1.xpose.msra.mxu0 0.0
        %730 = vmatprep.subr.mxu0 0.0
        %731 = vmatpush1.xpose.msra.mxu0 0.0
        %732 = vmatprep.subr.mxu0 0.0
        %733 = vmatpush1.xpose.msra.mxu0 0.0
        %734 = vmatprep.subr.mxu0 0.0
        %735 = vmatpush1.xpose.msra.mxu0 0.0
        %736 = vmatprep.subr.mxu0 0.0
        %737 = vmatpush1.xpose.msra.mxu0 0.0
        %738 = vmatprep.subr.mxu0 0.0
        %739 = vmatpush1.xpose.msra.mxu0 0.0
        %740 = vmatprep.subr.mxu0 0.0
        %741 = vmatpush1.xpose.msra.mxu0 0.0
        %742 = vmatprep.subr.mxu0 0.0
        %743 = vmatpush1.xpose.msra.mxu0 0.0
        %744 = vmatprep.subr.mxu0 0.0
        %745 = vmatpush1.xpose.msra.mxu0 0.0
        %746 = vmatprep.subr.mxu0 0.0
        %747 = vmatpush1.xpose.msra.mxu0 0.0
        %748 = vmatprep.subr.mxu0 0.0
        %749 = vmatpush1.xpose.msra.mxu0 0.0
        %750 = vmatprep.subr.mxu0 0.0
        %751 = vmatpush1.xpose.msra.mxu0 0.0
        %752 = vmatprep.subr.mxu0 0.0
        %753 = vmatpush1.xpose.msra.mxu0 0.0
        %754 = vmatprep.subr.mxu0 0.0
        %755 = vmatpush1.xpose.msra.mxu0 0.0
        %756 = vmatprep.subr.mxu0 0.0
        %757 = vmatpush1.xpose.msra.mxu0 0.0
        %758 = vmatprep.subr.mxu0 0.0
        %759 = vmatpush1.xpose.msra.mxu0 0.0
        %760 = vmatprep.subr.mxu0 0.0
        %761 = vmatpush1.xpose.msra.mxu0 0.0
        %762 = vmatprep.subr.mxu0 0.0
        %763 = vmatpush1.xpose.msra.mxu0 0.0
        %764 = vmatprep.mubr.f32.mxu0 0.0
        %765 = vmatmul.mubr.f32.gmra.mrb[0].mxu0 %v696
        %v766 = vpop.f32.mrb[0].mxu0
        %v767 = vadd.f32 0.0, %v766
        %v768 = vpop.f32.mrb[0].mxu0
        %769 = vdwg.mxu0
        %v770 = vmul.f32 %v767, 0.35355338
        %v771 = vsel %vm529, %v770, -inf
        %772 = vmax.xlane.f32.xlu0 %v771
        %v773 = vpop.xlane.xlu0 %772
        %v774 = vsub.f32 %v770, %v773
        %v775 = vmul.f32 %v774, 1.442695
        %v776 = vpow.pop %v775
        %v777 = vsel %vm529, %v776, 0.0
        %778 = vadd.xlane.f32.xlu0 %v777
        %v779 = vpop.xlane.xlu0 %778
        %v780 = vrcp.pop %v779
        %v781 = vmul.f32 %v776, %v780
        %782 = vrot.lane.b32.xlu0 %v519, 56
        %v783 = vpop.permute.xlu0 %782
        %v786 = vsel %vm529, %v781, 0
        %788 = vmatprep.subr.mxu0 0.0
        %789 = vmatpush1.msra.mxu0 %v783
        %790 = vmatprep.subr.mxu0 0.0
        %791 = vmatpush1.msra.mxu0 0.0
        %792 = vmatprep.subr.mxu0 0.0
        %793 = vmatpush1.msra.mxu0 0.0
        %794 = vmatprep.subr.mxu0 0.0
        %795 = vmatpush1.msra.mxu0 0.0
        %796 = vmatprep.subr.mxu0 0.0
        %797 = vmatpush1.msra.mxu0 0.0
        %798 = vmatprep.subr.mxu0 0.0
        %799 = vmatpush1.msra.mxu0 0.0
        %800 = vmatprep.subr.mxu0 0.0
        %801 = vmatpush1.msra.mxu0 0.0
        %802 = vmatprep.subr.mxu0 0.0
        %803 = vmatpush1.msra.mxu0 0.0
        %804 = vmatprep.subr.mxu0 0.0
        %805 = vmatpush1.msra.mxu0 0.0
        %806 = vmatprep.subr.mxu0 0.0
        %807 = vmatpush1.msra.mxu0 0.0
        %808 = vmatprep.subr.mxu0 0.0
        %809 = vmatpush1.msra.mxu0 0.0
        %810 = vmatprep.subr.mxu0 0.0
        %811 = vmatpush1.msra.mxu0 0.0
        %812 = vmatprep.subr.mxu0 0.0
        %813 = vmatpush1.msra.mxu0 0.0
        %814 = vmatprep.subr.mxu0 0.0
        %815 = vmatpush1.msra.mxu0 0.0
        %816 = vmatprep.subr.mxu0 0.0
        %817 = vmatpush1.msra.mxu0 0.0
        %818 = vmatprep.subr.mxu0 0.0
        %819 = vmatpush1.msra.mxu0 0.0
        %820 = vmatprep.subr.mxu0 0.0
        %821 = vmatpush1.msra.mxu0 0.0
        %822 = vmatprep.subr.mxu0 0.0
        %823 = vmatpush1.msra.mxu0 0.0
        %824 = vmatprep.subr.mxu0 0.0
        %825 = vmatpush1.msra.mxu0 0.0
        %826 = vmatprep.subr.mxu0 0.0
        %827 = vmatpush1.msra.mxu0 0.0
        %828 = vmatprep.subr.mxu0 0.0
        %829 = vmatpush1.msra.mxu0 0.0
        %830 = vmatprep.subr.mxu0 0.0
        %831 = vmatpush1.msra.mxu0 0.0
        %832 = vmatprep.subr.mxu0 0.0
        %833 = vmatpush1.msra.mxu0 0.0
        %834 = vmatprep.subr.mxu0 0.0
        %835 = vmatpush1.msra.mxu0 0.0
        %836 = vmatprep.subr.mxu0 0.0
        %837 = vmatpush1.msra.mxu0 0.0
        %838 = vmatprep.subr.mxu0 0.0
        %839 = vmatpush1.msra.mxu0 0.0
        %840 = vmatprep.subr.mxu0 0.0
        %841 = vmatpush1.msra.mxu0 0.0
        %842 = vmatprep.subr.mxu0 0.0
        %843 = vmatpush1.msra.mxu0 0.0
        %844 = vmatprep.subr.mxu0 0.0
        %845 = vmatpush1.msra.mxu0 0.0
        %846 = vmatprep.subr.mxu0 0.0
        %847 = vmatpush1.msra.mxu0 0.0
        %848 = vmatprep.subr.mxu0 0.0
        %849 = vmatpush1.msra.mxu0 0.0
        %850 = vmatprep.subr.mxu0 0.0
        %851 = vmatpush1.msra.mxu0 0.0
        %852 = vmatprep.mubr.f32.mxu0 0.0
        %853 = vmatmul.mubr.f32.gmra.mrb[0].mxu0 %v786
        %v854 = vpop.f32.mrb[0].mxu0
        %v855 = vadd.f32 0.0, %v854
        %v856 = vpop.f32.mrb[0].mxu0
        %857 = vdwg.mxu0
        %v859 = vsel %vm529, %v855, 0
        %861 = vmatprep.subr.mxu0 0.0
        %862 = vmatpush1.msra.mxu0 %v523
        %863 = vmatprep.subr.mxu0 0.0
        %864 = vmatpush1.msra.mxu0 0.0
        %865 = vmatprep.subr.mxu0 0.0
        %866 = vmatpush1.msra.mxu0 0.0
        %867 = vmatprep.subr.mxu0 0.0
        %868 = vmatpush1.msra.mxu0 0.0
        %869 = vmatprep.subr.mxu0 0.0
        %870 = vmatpush1.msra.mxu0 0.0
        %871 = vmatprep.subr.mxu0 0.0
        %872 = vmatpush1.msra.mxu0 0.0
        %873 = vmatprep.subr.mxu0 0.0
        %874 = vmatpush1.msra.mxu0 0.0
        %875 = vmatprep.subr.mxu0 0.0
        %876 = vmatpush1.msra.mxu0 0.0
        %877 = vmatprep.subr.mxu0 0.0
        %878 = vmatpush1.msra.mxu0 0.0
        %879 = vmatprep.subr.mxu0 0.0
        %880 = vmatpush1.msra.mxu0 0.0
        %881 = vmatprep.subr.mxu0 0.0
        %882 = vmatpush1.msra.mxu0 0.0
        %883 = vmatprep.subr.mxu0 0.0
        %884 = vmatpush1.msra.mxu0 0.0
        %885 = vmatprep.subr.mxu0 0.0
        %886 = vmatpush1.msra.mxu0 0.0
        %887 = vmatprep.subr.mxu0 0.0
        %888 = vmatpush1.msra.mxu0 0.0
        %889 = vmatprep.subr.mxu0 0.0
        %890 = vmatpush1.msra.mxu0 0.0
        %891 = vmatprep.subr.mxu0 0.0
        %892 = vmatpush1.msra.mxu0 0.0
        %893 = vmatprep.subr.mxu0 0.0
        %894 = vmatpush1.msra.mxu0 0.0
        %895 = vmatprep.subr.mxu0 0.0
        %896 = vmatpush1.msra.mxu0 0.0
        %897 = vmatprep.subr.mxu0 0.0
        %898 = vmatpush1.msra.mxu0 0.0
        %899 = vmatprep.subr.mxu0 0.0
        %900 = vmatpush1.msra.mxu0 0.0
        %901 = vmatprep.subr.mxu0 0.0
        %902 = vmatpush1.msra.mxu0 0.0
        %903 = vmatprep.subr.mxu0 0.0
        %904 = vmatpush1.msra.mxu0 0.0
        %905 = vmatprep.subr.mxu0 0.0
        %906 = vmatpush1.msra.mxu0 0.0
        %907 = vmatprep.subr.mxu0 0.0
        %908 = vmatpush1.msra.mxu0 0.0
        %909 = vmatprep.subr.mxu0 0.0
        %910 = vmatpush1.msra.mxu0 0.0
        %911 = vmatprep.subr.mxu0 0.0
        %912 = vmatpush1.msra.mxu0 0.0
        %913 = vmatprep.subr.mxu0 0.0
        %914 = vmatpush1.msra.mxu0 0.0
        %915 = vmatprep.subr.mxu0 0.0
        %916 = vmatpush1.msra.mxu0 0.0
        %917 = vmatprep.subr.mxu0 0.0
        %918 = vmatpush1.msra.mxu0 0.0
        %919 = vmatprep.subr.mxu0 0.0
        %920 = vmatpush1.msra.mxu0 0.0
        %921 = vmatprep.subr.mxu0 0.0
        %922 = vmatpush1.msra.mxu0 0.0
        %923 = vmatprep.subr.mxu0 0.0
        %924 = vmatpush1.msra.mxu0 0.0
        %925 = vmatprep.mubr.f32.mxu0 0.0
        %926 = vmatmul.mubr.f32.gmra.mrb[0].mxu0 %v859
        %v927 = vpop.f32.mrb[0].mxu0
        %v928 = vadd.f32 0.0, %v927
        %v929 = vpop.f32.mrb[0].mxu0
        %930 = vdwg.mxu0
        %v932 = vsel %vm529, %v689, 0
        %934 = vmatprep.subr.mxu0 0.0
        %935 = vmatpush1.msra.mxu0 %v522
        %936 = vmatprep.subr.mxu0 0.0
        %937 = vmatpush1.msra.mxu0 0.0
        %938 = vmatprep.subr.mxu0 0.0
        %939 = vmatpush1.msra.mxu0 0.0
        %940 = vmatprep.subr.mxu0 0.0
        %941 = vmatpush1.msra.mxu0 0.0
        %942 = vmatprep.subr.mxu0 0.0
        %943 = vmatpush1.msra.mxu0 0.0
        %944 = vmatprep.subr.mxu0 0.0
        %945 = vmatpush1.msra.mxu0 0.0
        %946 = vmatprep.subr.mxu0 0.0
        %947 = vmatpush1.msra.mxu0 0.0
        %948 = vmatprep.subr.mxu0 0.0
        %949 = vmatpush1.msra.mxu0 0.0
        %950 = vmatprep.subr.mxu0 0.0
        %951 = vmatpush1.msra.mxu0 0.0
        %952 = vmatprep.subr.mxu0 0.0
        %953 = vmatpush1.msra.mxu0 0.0
        %954 = vmatprep.subr.mxu0 0.0
        %955 = vmatpush1.msra.mxu0 0.0
        %956 = vmatprep.subr.mxu0 0.0
        %957 = vmatpush1.msra.mxu0 0.0
        %958 = vmatprep.subr.mxu0 0.0
        %959 = vmatpush1.msra.mxu0 0.0
        %960 = vmatprep.subr.mxu0 0.0
        %961 = vmatpush1.msra.mxu0 0.0
        %962 = vmatprep.subr.mxu0 0.0
        %963 = vmatpush1.msra.mxu0 0.0
        %964 = vmatprep.subr.mxu0 0.0
        %965 = vmatpush1.msra.mxu0 0.0
        %966 = vmatprep.subr.mxu0 0.0
        %967 = vmatpush1.msra.mxu0 0.0
        %968 = vmatprep.subr.mxu0 0.0
        %969 = vmatpush1.msra.mxu0 0.0
        %970 = vmatprep.subr.mxu0 0.0
        %971 = vmatpush1.msra.mxu0 0.0
        %972 = vmatprep.subr.mxu0 0.0
        %973 = vmatpush1.msra.mxu0 0.0
        %974 = vmatprep.subr.mxu0 0.0
        %975 = vmatpush1.msra.mxu0 0.0
        %976 = vmatprep.subr.mxu0 0.0
        %977 = vmatpush1.msra.mxu0 0.0
        %978 = vmatprep.subr.mxu0 0.0
        %979 = vmatpush1.msra.mxu0 0.0
        %980 = vmatprep.subr.mxu0 0.0
        %981 = vmatpush1.msra.mxu0 0.0
        %982 = vmatprep.subr.mxu0 0.0
        %983 = vmatpush1.msra.mxu0 0.0
        %984 = vmatprep.subr.mxu0 0.0
        %985 = vmatpush1.msra.mxu0 0.0
        %986 = vmatprep.subr.mxu0 0.0
        %987 = vmatpush1.msra.mxu0 0.0
        %988 = vmatprep.subr.mxu0 0.0
        %989 = vmatpush1.msra.mxu0 0.0
        %990 = vmatprep.subr.mxu0 0.0
        %991 = vmatpush1.msra.mxu0 0.0
        %992 = vmatprep.subr.mxu0 0.0
        %993 = vmatpush1.msra.mxu0 0.0
        %994 = vmatprep.subr.mxu0 0.0
        %995 = vmatpush1.msra.mxu0 0.0
        %996 = vmatprep.subr.mxu0 0.0
        %997 = vmatpush1.msra.mxu0 0.0
        %998 = vmatprep.mubr.f32.mxu0 0.0
        %999 = vmatmul.mubr.f32.gmra.mrb[0].mxu0 %v932
        %v1000 = vpop.f32.mrb[0].mxu0
        %v1001 = vadd.f32 %v928, %v1000
        %v1002 = vpop.f32.mrb[0].mxu0
        %1003 = vdwg.mxu0
        %1004 = vrot.lane.b32.xlu0 %v519, 112
        %v1005 = vpop.permute.xlu0 %1004
        %1006 = vrot.lane.b32.xlu0 %v519, 80
        %v1007 = vpop.permute.xlu0 %1006
        %v1008 = vsel %vm529, %v1005, 0
        %v1010 = vsel %vm529, %v1007, 0
        %1012 = vmatprep.subr.mxu0 0.0
        %1013 = vmatpush1.xpose.msra.mxu0 %v1010
        %1014 = vmatprep.subr.mxu0 0.0
        %1015 = vmatpush1.xpose.msra.mxu0 0.0
        %1016 = vmatprep.subr.mxu0 0.0
        %1017 = vmatpush1.xpose.msra.mxu0 0.0
        %1018 = vmatprep.subr.mxu0 0.0
        %1019 = vmatpush1.xpose.msra.mxu0 0.0
        %1020 = vmatprep.subr.mxu0 0.0
        %1021 = vmatpush1.xpose.msra.mxu0 0.0
        %1022 = vmatprep.subr.mxu0 0.0
        %1023 = vmatpush1.xpose.msra.mxu0 0.0
        %1024 = vmatprep.subr.mxu0 0.0
        %1025 = vmatpush1.xpose.msra.mxu0 0.0
        %1026 = vmatprep.subr.mxu0 0.0
        %1027 = vmatpush1.xpose.msra.mxu0 0.0
        %1028 = vmatprep.subr.mxu0 0.0
        %1029 = vmatpush1.xpose.msra.mxu0 0.0
        %1030 = vmatprep.subr.mxu0 0.0
        %1031 = vmatpush1.xpose.msra.mxu0 0.0
        %1032 = vmatprep.subr.mxu0 0.0
        %1033 = vmatpush1.xpose.msra.mxu0 0.0
        %1034 = vmatprep.subr.mxu0 0.0
        %1035 = vmatpush1.xpose.msra.mxu0 0.0
        %1036 = vmatprep.subr.mxu0 0.0
        %1037 = vmatpush1.xpose.msra.mxu0 0.0
        %1038 = vmatprep.subr.mxu0 0.0
        %1039 = vmatpush1.xpose.msra.mxu0 0.0
        %1040 = vmatprep.subr.mxu0 0.0
        %1041 = vmatpush1.xpose.msra.mxu0 0.0
        %1042 = vmatprep.subr.mxu0 0.0
        %1043 = vmatpush1.xpose.msra.mxu0 0.0
        %1044 = vmatprep.subr.mxu0 0.0
        %1045 = vmatpush1.xpose.msra.mxu0 0.0
        %1046 = vmatprep.subr.mxu0 0.0
        %1047 = vmatpush1.xpose.msra.mxu0 0.0
        %1048 = vmatprep.subr.mxu0 0.0
        %1049 = vmatpush1.xpose.msra.mxu0 0.0
        %1050 = vmatprep.subr.mxu0 0.0
        %1051 = vmatpush1.xpose.msra.mxu0 0.0
        %1052 = vmatprep.subr.mxu0 0.0
        %1053 = vmatpush1.xpose.msra.mxu0 0.0
        %1054 = vmatprep.subr.mxu0 0.0
        %1055 = vmatpush1.xpose.msra.mxu0 0.0
        %1056 = vmatprep.subr.mxu0 0.0
        %1057 = vmatpush1.xpose.msra.mxu0 0.0
        %1058 = vmatprep.subr.mxu0 0.0
        %1059 = vmatpush1.xpose.msra.mxu0 0.0
        %1060 = vmatprep.subr.mxu0 0.0
        %1061 = vmatpush1.xpose.msra.mxu0 0.0
        %1062 = vmatprep.subr.mxu0 0.0
        %1063 = vmatpush1.xpose.msra.mxu0 0.0
        %1064 = vmatprep.subr.mxu0 0.0
        %1065 = vmatpush1.xpose.msra.mxu0 0.0
        %1066 = vmatprep.subr.mxu0 0.0
        %1067 = vmatpush1.xpose.msra.mxu0 0.0
        %1068 = vmatprep.subr.mxu0 0.0
        %1069 = vmatpush1.xpose.msra.mxu0 0.0
        %1070 = vmatprep.subr.mxu0 0.0
        %1071 = vmatpush1.xpose.msra.mxu0 0.0
        %1072 = vmatprep.subr.mxu0 0.0
        %1073 = vmatpush1.xpose.msra.mxu0 0.0
        %1074 = vmatprep.subr.mxu0 0.0
        %1075 = vmatpush1.xpose.msra.mxu0 0.0
        %1076 = vmatprep.mubr.f32.mxu0 0.0
        %1077 = vmatmul.mubr.f32.gmra.mrb[0].mxu0 %v1008
        %v1078 = vpop.f32.mrb[0].mxu0
        %v1079 = vadd.f32 0.0, %v1078
        %v1080 = vpop.f32.mrb[0].mxu0
        %1081 = vdwg.mxu0
        %v1082 = vmul.f32 %v1079, 0.35355338
        %v1083 = vsel %vm529, %v1082, -inf
        %1084 = vmax.xlane.f32.xlu0 %v1083
        %v1085 = vpop.xlane.xlu0 %1084
        %v1086 = vsub.f32 %v1082, %v1085
        %v1087 = vmul.f32 %v1086, 1.442695
        %v1088 = vpow.pop %v1087
        %v1089 = vsel %vm529, %v1088, 0.0
        %1090 = vadd.xlane.f32.xlu0 %v1089
        %v1091 = vpop.xlane.xlu0 %1090
        %v1092 = vrcp.pop %v1091
        %v1093 = vmul.f32 %v1088, %v1092
        %1094 = vrot.lane.b32.xlu0 %v519, 48
        %v1095 = vpop.permute.xlu0 %1094
        %v1098 = vsel %vm529, %v1093, 0
        %1100 = vmatprep.subr.mxu0 0.0
        %1101 = vmatpush1.msra.mxu0 %v1095
        %1102 = vmatprep.subr.mxu0 0.0
        %1103 = vmatpush1.msra.mxu0 0.0
        %1104 = vmatprep.subr.mxu0 0.0
        %1105 = vmatpush1.msra.mxu0 0.0
        %1106 = vmatprep.subr.mxu0 0.0
        %1107 = vmatpush1.msra.mxu0 0.0
        %1108 = vmatprep.subr.mxu0 0.0
        %1109 = vmatpush1.msra.mxu0 0.0
        %1110 = vmatprep.subr.mxu0 0.0
        %1111 = vmatpush1.msra.mxu0 0.0
        %1112 = vmatprep.subr.mxu0 0.0
        %1113 = vmatpush1.msra.mxu0 0.0
        %1114 = vmatprep.subr.mxu0 0.0
        %1115 = vmatpush1.msra.mxu0 0.0
        %1116 = vmatprep.subr.mxu0 0.0
        %1117 = vmatpush1.msra.mxu0 0.0
        %1118 = vmatprep.subr.mxu0 0.0
        %1119 = vmatpush1.msra.mxu0 0.0
        %1120 = vmatprep.subr.mxu0 0.0
        %1121 = vmatpush1.msra.mxu0 0.0
        %1122 = vmatprep.subr.mxu0 0.0
        %1123 = vmatpush1.msra.mxu0 0.0
        %1124 = vmatprep.subr.mxu0 0.0
        %1125 = vmatpush1.msra.mxu0 0.0
        %1126 = vmatprep.subr.mxu0 0.0
        %1127 = vmatpush1.msra.mxu0 0.0
        %1128 = vmatprep.subr.mxu0 0.0
        %1129 = vmatpush1.msra.mxu0 0.0
        %1130 = vmatprep.subr.mxu0 0.0
        %1131 = vmatpush1.msra.mxu0 0.0
        %1132 = vmatprep.subr.mxu0 0.0
        %1133 = vmatpush1.msra.mxu0 0.0
        %1134 = vmatprep.subr.mxu0 0.0
        %1135 = vmatpush1.msra.mxu0 0.0
        %1136 = vmatprep.subr.mxu0 0.0
        %1137 = vmatpush1.msra.mxu0 0.0
        %1138 = vmatprep.subr.mxu0 0.0
        %1139 = vmatpush1.msra.mxu0 0.0
        %1140 = vmatprep.subr.mxu0 0.0
        %1141 = vmatpush1.msra.mxu0 0.0
        %1142 = vmatprep.subr.mxu0 0.0
        %1143 = vmatpush1.msra.mxu0 0.0
        %1144 = vmatprep.subr.mxu0 0.0
        %1145 = vmatpush1.msra.mxu0 0.0
        %1146 = vmatprep.subr.mxu0 0.0
        %1147 = vmatpush1.msra.mxu0 0.0
        %1148 = vmatprep.subr.mxu0 0.0
        %1149 = vmatpush1.msra.mxu0 0.0
        %1150 = vmatprep.subr.mxu0 0.0
        %1151 = vmatpush1.msra.mxu0 0.0
        %1152 = vmatprep.subr.mxu0 0.0
        %1153 = vmatpush1.msra.mxu0 0.0
        %1154 = vmatprep.subr.mxu0 0.0
        %1155 = vmatpush1.msra.mxu0 0.0
        %1156 = vmatprep.subr.mxu0 0.0
        %1157 = vmatpush1.msra.mxu0 0.0
        %1158 = vmatprep.subr.mxu0 0.0
        %1159 = vmatpush1.msra.mxu0 0.0
        %1160 = vmatprep.subr.mxu0 0.0
        %1161 = vmatpush1.msra.mxu0 0.0
        %1162 = vmatprep.subr.mxu0 0.0
        %1163 = vmatpush1.msra.mxu0 0.0
        %1164 = vmatprep.mubr.f32.mxu0 0.0
        %1165 = vmatmul.mubr.f32.gmra.mrb[0].mxu0 %v1098
        %v1166 = vpop.f32.mrb[0].mxu0
        %v1167 = vadd.f32 0.0, %v1166
        %v1168 = vpop.f32.mrb[0].mxu0
        %1169 = vdwg.mxu0
        %v1171 = vsel %vm529, %v1167, 0
        %1173 = vmatprep.subr.mxu0 0.0
        %1174 = vmatpush1.msra.mxu0 %v524
        %1175 = vmatprep.subr.mxu0 0.0
        %1176 = vmatpush1.msra.mxu0 0.0
        %1177 = vmatprep.subr.mxu0 0.0
        %1178 = vmatpush1.msra.mxu0 0.0
        %1179 = vmatprep.subr.mxu0 0.0
        %1180 = vmatpush1.msra.mxu0 0.0
        %1181 = vmatprep.subr.mxu0 0.0
        %1182 = vmatpush1.msra.mxu0 0.0
        %1183 = vmatprep.subr.mxu0 0.0
        %1184 = vmatpush1.msra.mxu0 0.0
        %1185 = vmatprep.subr.mxu0 0.0
        %1186 = vmatpush1.msra.mxu0 0.0
        %1187 = vmatprep.subr.mxu0 0.0
        %1188 = vmatpush1.msra.mxu0 0.0
        %1189 = vmatprep.subr.mxu0 0.0
        %1190 = vmatpush1.msra.mxu0 0.0
        %1191 = vmatprep.subr.mxu0 0.0
        %1192 = vmatpush1.msra.mxu0 0.0
        %1193 = vmatprep.subr.mxu0 0.0
        %1194 = vmatpush1.msra.mxu0 0.0
        %1195 = vmatprep.subr.mxu0 0.0
        %1196 = vmatpush1.msra.mxu0 0.0
        %1197 = vmatprep.subr.mxu0 0.0
        %1198 = vmatpush1.msra.mxu0 0.0
        %1199 = vmatprep.subr.mxu0 0.0
        %1200 = vmatpush1.msra.mxu0 0.0
        %1201 = vmatprep.subr.mxu0 0.0
        %1202 = vmatpush1.msra.mxu0 0.0
        %1203 = vmatprep.subr.mxu0 0.0
        %1204 = vmatpush1.msra.mxu0 0.0
        %1205 = vmatprep.subr.mxu0 0.0
        %1206 = vmatpush1.msra.mxu0 0.0
        %1207 = vmatprep.subr.mxu0 0.0
        %1208 = vmatpush1.msra.mxu0 0.0
        %1209 = vmatprep.subr.mxu0 0.0
        %1210 = vmatpush1.msra.mxu0 0.0
        %1211 = vmatprep.subr.mxu0 0.0
        %1212 = vmatpush1.msra.mxu0 0.0
        %1213 = vmatprep.subr.mxu0 0.0
        %1214 = vmatpush1.msra.mxu0 0.0
        %1215 = vmatprep.subr.mxu0 0.0
        %1216 = vmatpush1.msra.mxu0 0.0
        %1217 = vmatprep.subr.mxu0 0.0
        %1218 = vmatpush1.msra.mxu0 0.0
        %1219 = vmatprep.subr.mxu0 0.0
        %1220 = vmatpush1.msra.mxu0 0.0
        %1221 = vmatprep.subr.mxu0 0.0
        %1222 = vmatpush1.msra.mxu0 0.0
        %1223 = vmatprep.subr.mxu0 0.0
        %1224 = vmatpush1.msra.mxu0 0.0
        %1225 = vmatprep.subr.mxu0 0.0
        %1226 = vmatpush1.msra.mxu0 0.0
        %1227 = vmatprep.subr.mxu0 0.0
        %1228 = vmatpush1.msra.mxu0 0.0
        %1229 = vmatprep.subr.mxu0 0.0
        %1230 = vmatpush1.msra.mxu0 0.0
        %1231 = vmatprep.subr.mxu0 0.0
        %1232 = vmatpush1.msra.mxu0 0.0
        %1233 = vmatprep.subr.mxu0 0.0
        %1234 = vmatpush1.msra.mxu0 0.0
        %1235 = vmatprep.subr.mxu0 0.0
        %1236 = vmatpush1.msra.mxu0 0.0
        %1237 = vmatprep.mubr.f32.mxu0 0.0
        %1238 = vmatmul.mubr.f32.gmra.mrb[0].mxu0 %v1171
        %v1239 = vpop.f32.mrb[0].mxu0
        %v1240 = vadd.f32 0.0, %v1239
        %v1241 = vpop.f32.mrb[0].mxu0
        %1242 = vdwg.mxu0
        %v1243 = vadd.f32 %v1001, %v1240
        %1244 = vrot.lane.b32.xlu0 %v519, 104
        %v1245 = vpop.permute.xlu0 %1244
        %1246 = vrot.lane.b32.xlu0 %v519, 72
        %v1247 = vpop.permute.xlu0 %1246
        %v1248 = vsel %vm529, %v1245, 0
        %v1250 = vsel %vm529, %v1247, 0
        %1252 = vmatprep.subr.mxu0 0.0
        %1253 = vmatpush1.xpose.msra.mxu0 %v1250
        %1254 = vmatprep.subr.mxu0 0.0
        %1255 = vmatpush1.xpose.msra.mxu0 0.0
        %1256 = vmatprep.subr.mxu0 0.0
        %1257 = vmatpush1.xpose.msra.mxu0 0.0
        %1258 = vmatprep.subr.mxu0 0.0
        %1259 = vmatpush1.xpose.msra.mxu0 0.0
        %1260 = vmatprep.subr.mxu0 0.0
        %1261 = vmatpush1.xpose.msra.mxu0 0.0
        %1262 = vmatprep.subr.mxu0 0.0
        %1263 = vmatpush1.xpose.msra.mxu0 0.0
        %1264 = vmatprep.subr.mxu0 0.0
        %1265 = vmatpush1.xpose.msra.mxu0 0.0
        %1266 = vmatprep.subr.mxu0 0.0
        %1267 = vmatpush1.xpose.msra.mxu0 0.0
        %1268 = vmatprep.subr.mxu0 0.0
        %1269 = vmatpush1.xpose.msra.mxu0 0.0
        %1270 = vmatprep.subr.mxu0 0.0
        %1271 = vmatpush1.xpose.msra.mxu0 0.0
        %1272 = vmatprep.subr.mxu0 0.0
        %1273 = vmatpush1.xpose.msra.mxu0 0.0
        %1274 = vmatprep.subr.mxu0 0.0
        %1275 = vmatpush1.xpose.msra.mxu0 0.0
        %1276 = vmatprep.subr.mxu0 0.0
        %1277 = vmatpush1.xpose.msra.mxu0 0.0
        %1278 = vmatprep.subr.mxu0 0.0
        %1279 = vmatpush1.xpose.msra.mxu0 0.0
        %1280 = vmatprep.subr.mxu0 0.0
        %1281 = vmatpush1.xpose.msra.mxu0 0.0
        %1282 = vmatprep.subr.mxu0 0.0
        %1283 = vmatpush1.xpose.msra.mxu0 0.0
        %1284 = vmatprep.subr.mxu0 0.0
        %1285 = vmatpush1.xpose.msra.mxu0 0.0
        %1286 = vmatprep.subr.mxu0 0.0
        %1287 = vmatpush1.xpose.msra.mxu0 0.0
        %1288 = vmatprep.subr.mxu0 0.0
        %1289 = vmatpush1.xpose.msra.mxu0 0.0
        %1290 = vmatprep.subr.mxu0 0.0
        %1291 = vmatpush1.xpose.msra.mxu0 0.0
        %1292 = vmatprep.subr.mxu0 0.0
        %1293 = vmatpush1.xpose.msra.mxu0 0.0
        %1294 = vmatprep.subr.mxu0 0.0
        %1295 = vmatpush1.xpose.msra.mxu0 0.0
        %1296 = vmatprep.subr.mxu0 0.0
        %1297 = vmatpush1.xpose.msra.mxu0 0.0
        %1298 = vmatprep.subr.mxu0 0.0
        %1299 = vmatpush1.xpose.msra.mxu0 0.0
        %1300 = vmatprep.subr.mxu0 0.0
        %1301 = vmatpush1.xpose.msra.mxu0 0.0
        %1302 = vmatprep.subr.mxu0 0.0
        %1303 = vmatpush1.xpose.msra.mxu0 0.0
        %1304 = vmatprep.subr.mxu0 0.0
        %1305 = vmatpush1.xpose.msra.mxu0 0.0
        %1306 = vmatprep.subr.mxu0 0.0
        %1307 = vmatpush1.xpose.msra.mxu0 0.0
        %1308 = vmatprep.subr.mxu0 0.0
        %1309 = vmatpush1.xpose.msra.mxu0 0.0
        %1310 = vmatprep.subr.mxu0 0.0
        %1311 = vmatpush1.xpose.msra.mxu0 0.0
        %1312 = vmatprep.subr.mxu0 0.0
        %1313 = vmatpush1.xpose.msra.mxu0 0.0
        %1314 = vmatprep.subr.mxu0 0.0
        %1315 = vmatpush1.xpose.msra.mxu0 0.0
        %1316 = vmatprep.mubr.f32.mxu0 0.0
        %1317 = vmatmul.mubr.f32.gmra.mrb[0].mxu0 %v1248
        %v1318 = vpop.f32.mrb[0].mxu0
        %v1319 = vadd.f32 0.0, %v1318
        %v1320 = vpop.f32.mrb[0].mxu0
        %1321 = vdwg.mxu0
        %v1322 = vmul.f32 %v1319, 0.35355338
        %v1323 = vsel %vm529, %v1322, -inf
        %1324 = vmax.xlane.f32.xlu0 %v1323
        %v1325 = vpop.xlane.xlu0 %1324
        %v1326 = vsub.f32 %v1322, %v1325
        %v1327 = vmul.f32 %v1326, 1.442695
        %v1328 = vpow.pop %v1327
        %v1329 = vsel %vm529, %v1328, 0.0
        %1330 = vadd.xlane.f32.xlu0 %v1329
        %v1331 = vpop.xlane.xlu0 %1330
        %v1332 = vrcp.pop %v1331
        %v1333 = vmul.f32 %v1328, %v1332
        %1334 = vrot.lane.b32.xlu0 %v519, 40
        %v1335 = vpop.permute.xlu0 %1334
        %v1338 = vsel %vm529, %v1333, 0
        %1340 = vmatprep.subr.mxu0 0.0
        %1341 = vmatpush1.msra.mxu0 %v1335
        %1342 = vmatprep.subr.mxu0 0.0
        %1343 = vmatpush1.msra.mxu0 0.0
        %1344 = vmatprep.subr.mxu0 0.0
        %1345 = vmatpush1.msra.mxu0 0.0
        %1346 = vmatprep.subr.mxu0 0.0
        %1347 = vmatpush1.msra.mxu0 0.0
        %1348 = vmatprep.subr.mxu0 0.0
        %1349 = vmatpush1.msra.mxu0 0.0
        %1350 = vmatprep.subr.mxu0 0.0
        %1351 = vmatpush1.msra.mxu0 0.0
        %1352 = vmatprep.subr.mxu0 0.0
        %1353 = vmatpush1.msra.mxu0 0.0
        %1354 = vmatprep.subr.mxu0 0.0
        %1355 = vmatpush1.msra.mxu0 0.0
        %1356 = vmatprep.subr.mxu0 0.0
        %1357 = vmatpush1.msra.mxu0 0.0
        %1358 = vmatprep.subr.mxu0 0.0
        %1359 = vmatpush1.msra.mxu0 0.0
        %1360 = vmatprep.subr.mxu0 0.0
        %1361 = vmatpush1.msra.mxu0 0.0
        %1362 = vmatprep.subr.mxu0 0.0
        %1363 = vmatpush1.msra.mxu0 0.0
        %1364 = vmatprep.subr.mxu0 0.0
        %1365 = vmatpush1.msra.mxu0 0.0
        %1366 = vmatprep.subr.mxu0 0.0
        %1367 = vmatpush1.msra.mxu0 0.0
        %1368 = vmatprep.subr.mxu0 0.0
        %1369 = vmatpush1.msra.mxu0 0.0
        %1370 = vmatprep.subr.mxu0 0.0
        %1371 = vmatpush1.msra.mxu0 0.0
        %1372 = vmatprep.subr.mxu0 0.0
        %1373 = vmatpush1.msra.mxu0 0.0
        %1374 = vmatprep.subr.mxu0 0.0
        %1375 = vmatpush1.msra.mxu0 0.0
        %1376 = vmatprep.subr.mxu0 0.0
        %1377 = vmatpush1.msra.mxu0 0.0
        %1378 = vmatprep.subr.mxu0 0.0
        %1379 = vmatpush1.msra.mxu0 0.0
        %1380 = vmatprep.subr.mxu0 0.0
        %1381 = vmatpush1.msra.mxu0 0.0
        %1382 = vmatprep.subr.mxu0 0.0
        %1383 = vmatpush1.msra.mxu0 0.0
        %1384 = vmatprep.subr.mxu0 0.0
        %1385 = vmatpush1.msra.mxu0 0.0
        %1386 = vmatprep.subr.mxu0 0.0
        %1387 = vmatpush1.msra.mxu0 0.0
        %1388 = vmatprep.subr.mxu0 0.0
        %1389 = vmatpush1.msra.mxu0 0.0
        %1390 = vmatprep.subr.mxu0 0.0
        %1391 = vmatpush1.msra.mxu0 0.0
        %1392 = vmatprep.subr.mxu0 0.0
        %1393 = vmatpush1.msra.mxu0 0.0
        %1394 = vmatprep.subr.mxu0 0.0
        %1395 = vmatpush1.msra.mxu0 0.0
        %1396 = vmatprep.subr.mxu0 0.0
        %1397 = vmatpush1.msra.mxu0 0.0
        %1398 = vmatprep.subr.mxu0 0.0
        %1399 = vmatpush1.msra.mxu0 0.0
        %1400 = vmatprep.subr.mxu0 0.0
        %1401 = vmatpush1.msra.mxu0 0.0
        %1402 = vmatprep.subr.mxu0 0.0
        %1403 = vmatpush1.msra.mxu0 0.0
        %1404 = vmatprep.mubr.f32.mxu0 0.0
        %1405 = vmatmul.mubr.f32.gmra.mrb[0].mxu0 %v1338
        %v1406 = vpop.f32.mrb[0].mxu0
        %v1407 = vadd.f32 0.0, %v1406
        %v1408 = vpop.f32.mrb[0].mxu0
        %1409 = vdwg.mxu0
        %v1411 = vsel %vm529, %v1407, 0
        %1413 = vmatprep.subr.mxu0 0.0
        %1414 = vmatpush1.msra.mxu0 %v525
        %1415 = vmatprep.subr.mxu0 0.0
        %1416 = vmatpush1.msra.mxu0 0.0
        %1417 = vmatprep.subr.mxu0 0.0
        %1418 = vmatpush1.msra.mxu0 0.0
        %1419 = vmatprep.subr.mxu0 0.0
        %1420 = vmatpush1.msra.mxu0 0.0
        %1421 = vmatprep.subr.mxu0 0.0
        %1422 = vmatpush1.msra.mxu0 0.0
        %1423 = vmatprep.subr.mxu0 0.0
        %1424 = vmatpush1.msra.mxu0 0.0
        %1425 = vmatprep.subr.mxu0 0.0
        %1426 = vmatpush1.msra.mxu0 0.0
        %1427 = vmatprep.subr.mxu0 0.0
        %1428 = vmatpush1.msra.mxu0 0.0
        %1429 = vmatprep.subr.mxu0 0.0
        %1430 = vmatpush1.msra.mxu0 0.0
        %1431 = vmatprep.subr.mxu0 0.0
        %1432 = vmatpush1.msra.mxu0 0.0
        %1433 = vmatprep.subr.mxu0 0.0
        %1434 = vmatpush1.msra.mxu0 0.0
        %1435 = vmatprep.subr.mxu0 0.0
        %1436 = vmatpush1.msra.mxu0 0.0
        %1437 = vmatprep.subr.mxu0 0.0
        %1438 = vmatpush1.msra.mxu0 0.0
        %1439 = vmatprep.subr.mxu0 0.0
        %1440 = vmatpush1.msra.mxu0 0.0
        %1441 = vmatprep.subr.mxu0 0.0
        %1442 = vmatpush1.msra.mxu0 0.0
        %1443 = vmatprep.subr.mxu0 0.0
        %1444 = vmatpush1.msra.mxu0 0.0
        %1445 = vmatprep.subr.mxu0 0.0
        %1446 = vmatpush1.msra.mxu0 0.0
        %1447 = vmatprep.subr.mxu0 0.0
        %1448 = vmatpush1.msra.mxu0 0.0
        %1449 = vmatprep.subr.mxu0 0.0
        %1450 = vmatpush1.msra.mxu0 0.0
        %1451 = vmatprep.subr.mxu0 0.0
        %1452 = vmatpush1.msra.mxu0 0.0
        %1453 = vmatprep.subr.mxu0 0.0
        %1454 = vmatpush1.msra.mxu0 0.0
        %1455 = vmatprep.subr.mxu0 0.0
        %1456 = vmatpush1.msra.mxu0 0.0
        %1457 = vmatprep.subr.mxu0 0.0
        %1458 = vmatpush1.msra.mxu0 0.0
        %1459 = vmatprep.subr.mxu0 0.0
        %1460 = vmatpush1.msra.mxu0 0.0
        %1461 = vmatprep.subr.mxu0 0.0
        %1462 = vmatpush1.msra.mxu0 0.0
        %1463 = vmatprep.subr.mxu0 0.0
        %1464 = vmatpush1.msra.mxu0 0.0
        %1465 = vmatprep.subr.mxu0 0.0
        %1466 = vmatpush1.msra.mxu0 0.0
        %1467 = vmatprep.subr.mxu0 0.0
        %1468 = vmatpush1.msra.mxu0 0.0
        %1469 = vmatprep.subr.mxu0 0.0
        %1470 = vmatpush1.msra.mxu0 0.0
        %1471 = vmatprep.subr.mxu0 0.0
        %1472 = vmatpush1.msra.mxu0 0.0
        %1473 = vmatprep.subr.mxu0 0.0
        %1474 = vmatpush1.msra.mxu0 0.0
        %1475 = vmatprep.subr.mxu0 0.0
        %1476 = vmatpush1.msra.mxu0 0.0
        %1477 = vmatprep.mubr.f32.mxu0 0.0
        %1478 = vmatmul.mubr.f32.gmra.mrb[0].mxu0 %v1411
        %v1479 = vpop.f32.mrb[0].mxu0
        %v1480 = vadd.f32 0.0, %v1479
        %v1481 = vpop.f32.mrb[0].mxu0
        %1482 = vdwg.mxu0
        %v1483 = vadd.f32 %v1243, %v1480
        %v1484 = vld [vmem:[%s4] sm:$0x1]
        %v1486 = vlaneseq
        %v1487 = vshrl.u32 %v1486, 7
        %v1488 = vsub.s32 0, %v1487
        %v1489 = vrot.slane %v1484, %v1488
        %v1491 = vadd.f32 %v1483, %v1489
        %v1492 = vadd.f32 %v436, %v1491
        %v1493 = vld [vmem:[%s9] sm:$0x1]
        %v1494 = vld [vmem:[%s10] sm:$0x1]
        %v1495 = vsel %vm448, %v1492, 0.0
        %1496 = vadd.xlane.f32.xlu0 %v1495
        %v1497 = vpop.xlane.xlu0 %1496
        %v1498 = vrcp.pop 32.0
        %v1499 = vmul.f32 %v1497, %v1498
        %v1500 = vsub.f32 %v1492, %v1499
        %v1501 = vmul.f32 %v1500, %v1500
        %v1502 = vsel %vm448, %v1501, 0.0
        %1503 = vadd.xlane.f32.xlu0 %v1502
        %v1504 = vpop.xlane.xlu0 %1503
        %v1505 = vmul.f32 %v1504, %v1498
        %v1506 = vadd.f32 %v1505, 1e-05
        %v1507 = vrsqrt.pop %v1506
        %v1508 = vmul.f32 %v1500, %v1507
        %v1510 = vlaneseq
        %v1511 = vshrl.u32 %v1510, 7
        %v1512 = vsub.s32 0, %v1511
        %v1513 = vrot.slane %v1493, %v1512
        %v1515 = vmul.f32 %v1508, %v1513
        %v1517 = vlaneseq
        %v1518 = vshrl.u32 %v1517, 7
        %v1519 = vsub.s32 0, %v1518
        %v1520 = vrot.slane %v1494, %v1519
        %v1522 = vadd.f32 %v1515, %v1520
        %v1523 = vld [vmem:[%s5] sm:$0xff]
        %v1524 = vld [vmem:[%s5 + $0x8] sm:$0xff]
        %v1525 = vld [vmem:[%s5 + $0x10] sm:$0xff]
        %v1526 = vld [vmem:[%s5 + $0x18] sm:$0xff]
        %v1527 = vld [vmem:[%s6] sm:$0x1]
        %v1529 = vlaneseq
        %v1530 = vshrl.u32 %v1529, 7
        %v1531 = vsub.s32 0, %v1530
        %v1532 = vrot.slane %v1527, %v1531
        %v1535 = vsel %vm448, %v1522, 0
        %1537 = vmatprep.subr.mxu0 0.0
        %1538 = vmatpush1.msra.mxu0 %v1523
        %1539 = vmatprep.subr.mxu0 0.0
        %1540 = vmatpush1.msra.mxu0 %v1524
        %1541 = vmatprep.subr.mxu0 0.0
        %1542 = vmatpush1.msra.mxu0 %v1525
        %1543 = vmatprep.subr.mxu0 0.0
        %1544 = vmatpush1.msra.mxu0 %v1526
        %1545 = vmatprep.subr.mxu0 0.0
        %1546 = vmatpush1.msra.mxu0 0.0
        %1547 = vmatprep.subr.mxu0 0.0
        %1548 = vmatpush1.msra.mxu0 0.0
        %1549 = vmatprep.subr.mxu0 0.0
        %1550 = vmatpush1.msra.mxu0 0.0
        %1551 = vmatprep.subr.mxu0 0.0
        %1552 = vmatpush1.msra.mxu0 0.0
        %1553 = vmatprep.subr.mxu0 0.0
        %1554 = vmatpush1.msra.mxu0 0.0
        %1555 = vmatprep.subr.mxu0 0.0
        %1556 = vmatpush1.msra.mxu0 0.0
        %1557 = vmatprep.subr.mxu0 0.0
        %1558 = vmatpush1.msra.mxu0 0.0
        %1559 = vmatprep.subr.mxu0 0.0
        %1560 = vmatpush1.msra.mxu0 0.0
        %1561 = vmatprep.subr.mxu0 0.0
        %1562 = vmatpush1.msra.mxu0 0.0
        %1563 = vmatprep.subr.mxu0 0.0
        %1564 = vmatpush1.msra.mxu0 0.0
        %1565 = vmatprep.subr.mxu0 0.0
        %1566 = vmatpush1.msra.mxu0 0.0
        %1567 = vmatprep.subr.mxu0 0.0
        %1568 = vmatpush1.msra.mxu0 0.0
        %1569 = vmatprep.subr.mxu0 0.0
        %1570 = vmatpush1.msra.mxu0 0.0
        %1571 = vmatprep.subr.mxu0 0.0
        %1572 = vmatpush1.msra.mxu0 0.0
        %1573 = vmatprep.subr.mxu0 0.0
        %1574 = vmatpush1.msra.mxu0 0.0
        %1575 = vmatprep.subr.mxu0 0.0
        %1576 = vmatpush1.msra.mxu0 0.0
        %1577 = vmatprep.subr.mxu0 0.0
        %1578 = vmatpush1.msra.mxu0 0.0
        %1579 = vmatprep.subr.mxu0 0.0
        %1580 = vmatpush1.msra.mxu0 0.0
        %1581 = vmatprep.subr.mxu0 0.0
        %1582 = vmatpush1.msra.mxu0 0.0
        %1583 = vmatprep.subr.mxu0 0.0
        %1584 = vmatpush1.msra.mxu0 0.0
        %1585 = vmatprep.subr.mxu0 0.0
        %1586 = vmatpush1.msra.mxu0 0.0
        %1587 = vmatprep.subr.mxu0 0.0
        %1588 = vmatpush1.msra.mxu0 0.0
        %1589 = vmatprep.subr.mxu0 0.0
        %1590 = vmatpush1.msra.mxu0 0.0
        %1591 = vmatprep.subr.mxu0 0.0
        %1592 = vmatpush1.msra.mxu0 0.0
        %1593 = vmatprep.subr.mxu0 0.0
        %1594 = vmatpush1.msra.mxu0 0.0
        %1595 = vmatprep.subr.mxu0 0.0
        %1596 = vmatpush1.msra.mxu0 0.0
        %1597 = vmatprep.subr.mxu0 0.0
        %1598 = vmatpush1.msra.mxu0 0.0
        %1599 = vmatprep.subr.mxu0 0.0
        %1600 = vmatpush1.msra.mxu0 0.0
        %1601 = vmatprep.mubr.f32.mxu0 0.0
        %1602 = vmatmul.mubr.f32.gmra.mrb[0].mxu0 %v1535
        %v1603 = vpop.f32.mrb[0].mxu0
        %v1604 = vadd.f32 %v1532, %v1603
        %v1605 = vpop.f32.mrb[0].mxu0
        %1606 = vdwg.mxu0
        %v1607 = vmax.f32 %v1604, 0.0
        %v1608 = vld [vmem:[%s7] sm:$0xff]
        %v1609 = vld [vmem:[%s7 + $0x8] sm:$0xff]
        %v1610 = vld [vmem:[%s7 + $0x10] sm:$0xff]
        %v1611 = vld [vmem:[%s7 + $0x18] sm:$0xff]
        %v1612 = vld [vmem:[%s7 + $0x20] sm:$0xff]
        %v1613 = vld [vmem:[%s7 + $0x28] sm:$0xff]
        %v1614 = vld [vmem:[%s7 + $0x30] sm:$0xff]
        %v1615 = vld [vmem:[%s7 + $0x38] sm:$0xff]
        %v1616 = vld [vmem:[%s8] sm:$0x1]
        %v1618 = vlaneseq
        %v1619 = vshrl.u32 %v1618, 7
        %v1620 = vsub.s32 0, %v1619
        %v1621 = vrot.slane %v1616, %v1620
        %vm1623 = vcmask 523264
        %v1625 = vsel %vm1623, %v1607, 0
        %1627 = vmatprep.subr.mxu0 0.0
        %1628 = vmatpush1.msra.mxu0 %v1608
        %1629 = vmatprep.subr.mxu0 0.0
        %1630 = vmatpush1.msra.mxu0 %v1609
        %1631 = vmatprep.subr.mxu0 0.0
        %1632 = vmatpush1.msra.mxu0 %v1610
        %1633 = vmatprep.subr.mxu0 0.0
        %1634 = vmatpush1.msra.mxu0 %v1611
        %1635 = vmatprep.subr.mxu0 0.0
        %1636 = vmatpush1.msra.mxu0 %v1612
        %1637 = vmatprep.subr.mxu0 0.0
        %1638 = vmatpush1.msra.mxu0 %v1613
        %1639 = vmatprep.subr.mxu0 0.0
        %1640 = vmatpush1.msra.mxu0 %v1614
        %1641 = vmatprep.subr.mxu0 0.0
        %1642 = vmatpush1.msra.mxu0 %v1615
        %1643 = vmatprep.subr.mxu0 0.0
        %1644 = vmatpush1.msra.mxu0 0.0
        %1645 = vmatprep.subr.mxu0 0.0
        %1646 = vmatpush1.msra.mxu0 0.0
        %1647 = vmatprep.subr.mxu0 0.0
        %1648 = vmatpush1.msra.mxu0 0.0
        %1649 = vmatprep.subr.mxu0 0.0
        %1650 = vmatpush1.msra.mxu0 0.0
        %1651 = vmatprep.subr.mxu0 0.0
        %1652 = vmatpush1.msra.mxu0 0.0
        %1653 = vmatprep.subr.mxu0 0.0
        %1654 = vmatpush1.msra.mxu0 0.0
        %1655 = vmatprep.subr.mxu0 0.0
        %1656 = vmatpush1.msra.mxu0 0.0
        %1657 = vmatprep.subr.mxu0 0.0
        %1658 = vmatpush1.msra.mxu0 0.0
        %1659 = vmatprep.subr.mxu0 0.0
        %1660 = vmatpush1.msra.mxu0 0.0
        %1661 = vmatprep.subr.mxu0 0.0
        %1662 = vmatpush1.msra.mxu0 0.0
        %1663 = vmatprep.subr.mxu0 0.0
        %1664 = vmatpush1.msra.mxu0 0.0
        %1665 = vmatprep.subr.mxu0 0.0
        %1666 = vmatpush1.msra.mxu0 0.0
        %1667 = vmatprep.subr.mxu0 0.0
        %1668 = vmatpush1.msra.mxu0 0.0
        %1669 = vmatprep.subr.mxu0 0.0
        %1670 = vmatpush1.msra.mxu0 0.0
        %1671 = vmatprep.subr.mxu0 0.0
        %1672 = vmatpush1.msra.mxu0 0.0
        %1673 = vmatprep.subr.mxu0 0.0
        %1674 = vmatpush1.msra.mxu0 0.0
        %1675 = vmatprep.subr.mxu0 0.0
        %1676 = vmatpush1.msra.mxu0 0.0
        %1677 = vmatprep.subr.mxu0 0.0
        %1678 = vmatpush1.msra.mxu0 0.0
        %1679 = vmatprep.subr.mxu0 0.0
        %1680 = vmatpush1.msra.mxu0 0.0
        %1681 = vmatprep.subr.mxu0 0.0
        %1682 = vmatpush1.msra.mxu0 0.0
        %1683 = vmatprep.subr.mxu0 0.0
        %1684 = vmatpush1.msra.mxu0 0.0
        %1685 = vmatprep.subr.mxu0 0.0
        %1686 = vmatpush1.msra.mxu0 0.0
        %1687 = vmatprep.subr.mxu0 0.0
        %1688 = vmatpush1.msra.mxu0 0.0
        %1689 = vmatprep.subr.mxu0 0.0
        %1690 = vmatpush1.msra.mxu0 0.0
        %1691 = vmatprep.mubr.f32.mxu0 0.0
        %1692 = vmatmul.mubr.f32.gmra.mrb[0].mxu0 %v1625
        %v1693 = vpop.f32.mrb[0].mxu0
        %v1694 = vadd.f32 %v1621, %v1693
        %v1695 = vpop.f32.mrb[0].mxu0
        %1696 = vdwg.mxu0
        %v1697 = vadd.f32 %v1522, %v1694
        %v1698 = vld [vmem:[%s11] sm:$0x1]
        %v1699 = vld [vmem:[%s12] sm:$0x1]
        %v1700 = vsel %vm448, %v1697, 0.0
        %1701 = vadd.xlane.f32.xlu0 %v1700
        %v1702 = vpop.xlane.xlu0 %1701
        %v1703 = vmul.f32 %v1702, %v1498
        %v1704 = vsub.f32 %v1697, %v1703
        %v1705 = vmul.f32 %v1704, %v1704
        %v1706 = vsel %vm448, %v1705, 0.0
        %1707 = vadd.xlane.f32.xlu0 %v1706
        %v1708 = vpop.xlane.xlu0 %1707
        %v1709 = vmul.f32 %v1708, %v1498
        %v1710 = vadd.f32 %v1709, 1e-05
        %v1711 = vrsqrt.pop %v1710
        %v1712 = vmul.f32 %v1704, %v1711
        %v1714 = vlaneseq
        %v1715 = vshrl.u32 %v1714, 7
        %v1716 = vsub.s32 0, %v1715
        %v1717 = vrot.slane %v1698, %v1716
        %v1719 = vmul.f32 %v1712, %v1717
        %v1721 = vlaneseq
        %v1722 = vshrl.u32 %v1721, 7
        %v1723 = vsub.s32 0, %v1722
        %v1724 = vrot.slane %v1699, %v1723
        %v1726 = vadd.f32 %v1719, %v1724
        %1727 = vst.msk [vmem:[%s431] sm:$0xff] %vm448, %v1726
        %s1728 = sand.u32 %s313, 1
        %s1729 = scalar_lea.sflag [#allocation3], %s1728
        %s1730 = sand.u32 %s313, 1
        %s1731 = smul.addr %s1730, 8
        %s1732 = scalar_lea.vmem [#allocation2], %s1731
        // Predicated region
        $region73: #{surrogate_transformer_block.1} parent=71 // pred_check
          %p1733 = pneg %p323
        $region74: #{surrogate_transformer_block.1} parent=71 // pred_check_branch
          %1735 = sbr.rel (%p1733) target = $region76
        $region75: #{surrogate_transformer_block.1} parent=71 // pred_region
          %s1737 = ssub.s32 128, 128
          %1738 = vsyncadd %s1729, %s1737
          %s1739 = smul.addr %s27, 128
          %s1740 = scalar_lea.hbm %s13, %s1739
          %s1742 = sshll.u32 %s1732, 4
          %s1743 = int_to_ptr.vmem [resolvable:$true] %s1742
          %1745 = dma.vmem_to_hbm [thread:$0]  %s1743, 128, %s1740, %s1729
        $region76: #{surrogate_transformer_block.1} parent=71 // pred_fallthru
          _
      $region72: #{surrogate_transformer_block.1} parent=5 // pred_fallthru
        _
      %p1746 = scmp.le.s32.totalorder 2, %s22
      // Predicated region
      $region77: #{surrogate_transformer_block.1} parent=5 // pred_check
        %p1747 = pneg %p1746
      $region78: #{surrogate_transformer_block.1} parent=5 // pred_check_branch
        %1749 = sbr.rel (%p1747) target = $region80
      $region79: #{surrogate_transformer_block.1} parent=5 // pred_region
        %s1750 = ssub.s32 %s22, 2
        // Predicated region
        $region81: #{surrogate_transformer_block.1} parent=79 // pred_check
          %p1751 = pneg %p329
        $region82: #{surrogate_transformer_block.1} parent=79 // pred_check_branch
          %1753 = sbr.rel (%p1751) target = $region84
        $region83: #{surrogate_transformer_block.1} parent=79 // pred_region
          %s1754 = sand.u32 %s314, 1
          %s1755 = scalar_lea.sflag [#allocation3], %s1754
          %s1756 = sand.u32 %s314, 1
          %s1757 = smul.addr %s1756, 8
          %s1758 = scalar_lea.vmem [#allocation2], %s1757
          %1759 = dma.done %s1755, 128
        $region84: #{surrogate_transformer_block.1} parent=79 // pred_fallthru
          _
      $region80: #{surrogate_transformer_block.1} parent=5 // pred_fallthru
        _
    $region6: #{surrogate_transformer_block.1} parent=1 // loop_footer
      %s26 = sadd.s32 1, %s22
    $region7: #{surrogate_transformer_block.1} parent=1 // loop_footer_branch
      %21 = sbr.rel target = $region3
    $region8: #{surrogate_transformer_block.1} parent=1 // loop_exit
      _
    %1760 = vsyncpa [#allocation3], 1
    %s1761 = scalar_lea.sflag [#allocation3], 1
    %1762 = vsyncpa %s1761, 1

</llo_original>
